<compile_context>
chip_gen: v7x
topology: tpu7x:2x2x1
jax: 0.10.0
libtpu: 0.0.40
codegen_flags: <defaults>
</compile_context>

<pallas_src>
import math

import jax
import jax.numpy as jnp
from jax.experimental import pallas as pl
from jax.experimental.pallas import tpu as pltpu


DEGREES = 4
L1, O1, O2, O3 = 28 * 28, 32, 16, 10
BATCH_TILE = 512     # batch rows per grid step


# ----------------------------------------------------------------------------
# Fused Pallas kernel: GRAM -> LN -> GRAM -> LN -> GRAM
# ----------------------------------------------------------------------------
def gram_fused_kernel(coeff_ref, x_ref, w1_ref, b1_ref, g1_ref, bn1_ref,
                      w2_ref, b2_ref, g2_ref, bn2_ref, w3_ref, b3_ref,
                      out_ref):
    """coeff_ref : SMEM (3, DEGREES+1) f32 -- beta(i-1, i) per layer.
    x_ref     : VMEM (TB, 784) f32           -- flattened input tile.
    w{k}_ref  : VMEM (DEGREES, L_k, O_k) bf16 -- per-degree basis weights
                (degree-0 slice folded into b{k}_ref).
    b{k}_ref  : VMEM (1, O_k) f32            -- sum_l W[l, :, 0] bias.
    g/bn refs : VMEM (1, O_k) f32            -- LayerNorm affine params.
    out_ref   : VMEM (TB, O3) f32
    """
    d = DEGREES

    def gram_block(h, layer, w_ref, bias_ref):
        # tanh + Gram recurrence in f32; per-degree bf16 MXU dots, f32 acc.
        t = jnp.tanh(h)                                   # (TB, L) f32
        acc = jnp.dot(t.astype(jnp.bfloat16), w_ref[0],   # degree 1
                      preferred_element_type=jnp.float32)
        p_prev2 = None                                    # P0 == 1 (implicit)
        p_prev1 = t                                       # P1
        for i in range(2, d + 1):
            c = coeff_ref[layer, i]                       # scalar from SMEM
            if p_prev2 is None:
                p = t * p_prev1 - c                       # P2 = t*P1 - c*1
            else:
                p = t * p_prev1 - c * p_prev2             # Pi = t*P(i-1) - c*P(i-2)
            acc = acc + jnp.dot(p.astype(jnp.bfloat16), w_ref[i - 1],
                                preferred_element_type=jnp.float32)
            p_prev2, p_prev1 = p_prev1, p
        return acc + bias_ref[...]                        # degree-0 contribution

    def layer_norm(v, g_ref, b_ref):
        mean = jnp.mean(v, axis=-1, keepdims=True)
        var = jnp.mean(jnp.square(v - mean), axis=-1, keepdims=True)
        return (v - mean) * jax.lax.rsqrt(var + 1e-5) * g_ref[...] + b_ref[...]

    h = x_ref[...]                                        # (TB, 784) f32
    h = gram_block(h, 0, w1_ref, b1_ref)                  # (TB, 32)
    h = layer_norm(h, g1_ref, bn1_ref)
    h = gram_block(h, 1, w2_ref, b2_ref)                  # (TB, 16)
    h = layer_norm(h, g2_ref, bn2_ref)
    h = gram_block(h, 2, w3_ref, b3_ref)                  # (TB, 10)
    out_ref[...] = h


# ----------------------------------------------------------------------------
# Parameter preparation (wrapper-side, cheap XLA ops)
# ----------------------------------------------------------------------------
def _beta_scales(degrees):
    """Static part of beta(i-1, i): identical arithmetic to the PyTorch module."""
    s = [0.0] * (degrees + 1)
    for i in range(2, degrees + 1):
        n, m = float(i - 1), float(i)
        s[i] = (m + n) * (m - n) * n ** 2 / (m ** 2 / (4.0 * n ** 2 - 1.0))
    return jnp.asarray(s, dtype=jnp.float32)


def _prep_gram_layer(basis_weights, beta_weights, degrees):
    """Returns (weights bf16 (d, L, O), bias f32 (1, O), coeffs f32 (d+1,))."""
    # Degree-0 polynomial is all-ones -> its matmul collapses to a bias.
    bias = jnp.sum(basis_weights[:, :, 0], axis=0, keepdims=True).astype(jnp.float32)
    # Degrees 1..d, one (L, O) slab per degree.
    w = jnp.transpose(basis_weights[:, :, 1:], (2, 0, 1)).astype(jnp.bfloat16)
    # coeffs[i] = scale(i-1, i) * beta_weights[i-1]
    shifted = jnp.concatenate(
        [jnp.zeros((1,), jnp.float32), beta_weights[:degrees].astype(jnp.float32)])
    coeffs = _beta_scales(degrees) * shifted
    return w, bias, coeffs


# ----------------------------------------------------------------------------
# Full GRAM forward (one pallas_call)
# ----------------------------------------------------------------------------
def gram_forward(params, x):
    B = x.shape[0]
    h = x.reshape(B, -1).astype(jnp.float32)                       # (B, 784)

    w1, b1, c1 = _prep_gram_layer(params["l1"]["basis_weights"],
                                  params["l1"]["beta_weights"], DEGREES)
    w2, b2, c2 = _prep_gram_layer(params["l2"]["basis_weights"],
                                  params["l2"]["beta_weights"], DEGREES)
    w3, b3, c3 = _prep_gram_layer(params["l3"]["basis_weights"],
                                  params["l3"]["beta_weights"], DEGREES)
    coeffs = jnp.stack([c1, c2, c3], axis=0)                       # (3, DEGREES+1)

    g1 = params["ln1"]["gamma"].reshape(1, O1).astype(jnp.float32)
    bn1 = params["ln1"]["beta"].reshape(1, O1).astype(jnp.float32)
    g2 = params["ln2"]["gamma"].reshape(1, O2).astype(jnp.float32)
    bn2 = params["ln2"]["beta"].reshape(1, O2).astype(jnp.float32)

    # Batch tiling: single full-size block for small B, 512-row tiles otherwise.
    if B <= BATCH_TILE:
        tb, b_pad = B, B
    else:
        tb = BATCH_TILE
        b_pad = pl.cdiv(B, tb) * tb
        if b_pad != B:
            h = jnp.pad(h, ((0, b_pad - B), (0, 0)))   # tanh(0)=0 rows, sliced off

    out = pl.pallas_call(
        gram_fused_kernel,
        out_shape=jax.ShapeDtypeStruct((b_pad, O3), jnp.float32),
        grid=(b_pad // tb,),
        in_specs=[
            pl.BlockSpec(memory_space=pltpu.MemorySpace.SMEM),        # coeffs
            pl.BlockSpec((tb, L1), lambda b: (b, 0)),                 # x tile
            pl.BlockSpec((DEGREES, L1, O1), lambda b: (0, 0, 0)),     # w1
            pl.BlockSpec((1, O1), lambda b: (0, 0)),                  # b1
            pl.BlockSpec((1, O1), lambda b: (0, 0)),                  # ln1 gamma
            pl.BlockSpec((1, O1), lambda b: (0, 0)),                  # ln1 beta
            pl.BlockSpec((DEGREES, O1, O2), lambda b: (0, 0, 0)),     # w2
            pl.BlockSpec((1, O2), lambda b: (0, 0)),                  # b2
            pl.BlockSpec((1, O2), lambda b: (0, 0)),                  # ln2 gamma
            pl.BlockSpec((1, O2), lambda b: (0, 0)),                  # ln2 beta
            pl.BlockSpec((DEGREES, O2, O3), lambda b: (0, 0, 0)),     # w3
            pl.BlockSpec((1, O3), lambda b: (0, 0)),                  # b3
        ],
        out_specs=pl.BlockSpec((tb, O3), lambda b: (b, 0)),
        compiler_params=pltpu.CompilerParams(
            dimension_semantics=("parallel",),
            vmem_limit_bytes=32 * 1024 * 1024,
        ),
    )(coeffs, h, w1, b1, g1, bn1, w2, b2, g2, bn2, w3, b3)

    return out[:B]


# ----------------------------------------------------------------------------
# Parameter init (deterministic, mirrors the PyTorch __init__ shapes)
# ----------------------------------------------------------------------------
def init_gram_layer_params(key, in_channels, out_channels, degrees):
    k_beta, k_basis = jax.random.split(key)
    # nn.init.normal_(beta_weights, mean=0, std=1/(in_channels*(degrees+1)))
    beta_weights = jax.random.normal(k_beta, (degrees + 1,), jnp.float32) * (
        1.0 / (in_channels * (degrees + 1.0)))
    # nn.init.xavier_uniform_ on (L, O, d+1): fan_in=O*(d+1), fan_out=L*(d+1)
    fan_in = out_channels * (degrees + 1)
    fan_out = in_channels * (degrees + 1)
    bound = math.sqrt(6.0 / (fan_in + fan_out))
    basis_weights = jax.random.uniform(
        k_basis, (in_channels, out_channels, degrees + 1), jnp.float32,
        minval=-bound, maxval=bound)
    return {"beta_weights": beta_weights, "basis_weights": basis_weights}


def init_gram_params(key):
    k1, k2, k3 = jax.random.split(key, 3)
    return {
        "l1": init_gram_layer_params(k1, L1, O1, DEGREES),
        "ln1": {"gamma": jnp.ones((O1,), jnp.float32),
                "beta": jnp.zeros((O1,), jnp.float32)},
        "l2": init_gram_layer_params(k2, O1, O2, DEGREES),
        "ln2": {"gamma": jnp.ones((O2,), jnp.float32),
                "beta": jnp.zeros((O2,), jnp.float32)},
        "l3": init_gram_layer_params(k3, O2, O3, DEGREES),
    }


if __name__ == "__main__":
    key = jax.random.PRNGKey(0)
    k_x, k_p = jax.random.split(key)

    # Input consistent with GRAM: flattens to 28*28 = 784 features.
    x = jax.random.normal(k_x, (2, 1, 28, 28), dtype=jnp.float32)
    params = init_gram_params(k_p)

    y = jax.jit(gram_forward)(params, x)
    y = jax.block_until_ready(y)

    assert y.shape == (2, 10), y.shape
    assert bool(jnp.all(jnp.isfinite(y)))
    print("KERNEL_OK")
</pallas_src>

<mosaic_0001>
module attributes {stable_mosaic.version = 11 : i64} {
  func.func @gram_fused_kernel(%arg0: i32, %arg1: memref<3x5xf32, #tpu.memory_space<smem>>, %arg2: memref<2x784xf32, #tpu.memory_space<vmem>>, %arg3: memref<4x784x32xbf16, #tpu.memory_space<vmem>>, %arg4: memref<1x32xf32, #tpu.memory_space<vmem>>, %arg5: memref<1x32xf32, #tpu.memory_space<vmem>>, %arg6: memref<1x32xf32, #tpu.memory_space<vmem>>, %arg7: memref<4x32x16xbf16, #tpu.memory_space<vmem>>, %arg8: memref<1x16xf32, #tpu.memory_space<vmem>>, %arg9: memref<1x16xf32, #tpu.memory_space<vmem>>, %arg10: memref<1x16xf32, #tpu.memory_space<vmem>>, %arg11: memref<4x16x10xbf16, #tpu.memory_space<vmem>>, %arg12: memref<1x10xf32, #tpu.memory_space<vmem>>, %arg13: memref<2x10xf32, #tpu.memory_space<vmem>>) attributes {dimension_semantics = [#tpu.dimension_semantics<parallel>], iteration_bounds = array<i64: 1>, scalar_prefetch = 0 : i64, scratch_operands = 0 : i64, tpu.core_type = #tpu.core_type<tc>, window_params = [{transform_indices = @transform_0, window_bounds = array<i64: 3, 5>}, {transform_indices = @transform_1, window_bounds = array<i64: 2, 784>}, {pipeline_mode = #tpu.pipeline_mode<synchronous>, transform_indices = @transform_2, window_bounds = array<i64: 4, 784, 32>}, {pipeline_mode = #tpu.pipeline_mode<synchronous>, transform_indices = @transform_3, window_bounds = array<i64: 1, 32>}, {pipeline_mode = #tpu.pipeline_mode<synchronous>, transform_indices = @transform_4, window_bounds = array<i64: 1, 32>}, {pipeline_mode = #tpu.pipeline_mode<synchronous>, transform_indices = @transform_5, window_bounds = array<i64: 1, 32>}, {pipeline_mode = #tpu.pipeline_mode<synchronous>, transform_indices = @transform_6, window_bounds = array<i64: 4, 32, 16>}, {pipeline_mode = #tpu.pipeline_mode<synchronous>, transform_indices = @transform_7, window_bounds = array<i64: 1, 16>}, {pipeline_mode = #tpu.pipeline_mode<synchronous>, transform_indices = @transform_8, window_bounds = array<i64: 1, 16>}, {pipeline_mode = #tpu.pipeline_mode<synchronous>, transform_indices = @transform_9, window_bounds = array<i64: 1, 16>}, {pipeline_mode = #tpu.pipeline_mode<synchronous>, transform_indices = @transform_10, window_bounds = array<i64: 4, 16, 10>}, {pipeline_mode = #tpu.pipeline_mode<synchronous>, transform_indices = @transform_11, window_bounds = array<i64: 1, 10>}, {transform_indices = @transform_12, window_bounds = array<i64: 2, 10>}]} {
    %c0 = arith.constant 0 : index
    %c0_0 = arith.constant 0 : index
    %0 = vector.load %arg2[%c0, %c0_0] : memref<2x784xf32, #tpu.memory_space<vmem>>, vector<2x784xf32>
    %1 = math.tanh %0 : vector<2x784xf32>
    %2 = arith.truncf %1 : vector<2x784xf32> to vector<2x784xbf16>
    %c0_1 = arith.constant 0 : index
    %c0_2 = arith.constant 0 : index
    %c0_3 = arith.constant 0 : index
    %3 = vector.load %arg3[%c0_1, %c0_2, %c0_3] : memref<4x784x32xbf16, #tpu.memory_space<vmem>>, vector<1x784x32xbf16>
    %4 = vector.shape_cast %3 : vector<1x784x32xbf16> to vector<784x32xbf16>
    %cst = arith.constant dense<0.000000e+00> : vector<2x32xf32>
    %5 = tpu.matmul %2, %4, %cst {dimension_numbers = #tpu.dot_dimension_numbers<[1], [0], [0], [1], [0, 0, 1, 1], [], []>} : vector<2x784xbf16>, vector<784x32xbf16>, vector<2x32xf32> -> vector<2x32xf32>
    %c0_4 = arith.constant 0 : index
    %c2 = arith.constant 2 : index
    %6 = memref.load %arg1[%c0_4, %c2] : memref<3x5xf32, #tpu.memory_space<smem>>
    %7 = arith.mulf %1, %1 : vector<2x784xf32>
    %8 = vector.broadcast %6 : f32 to vector<2x784xf32>
    %9 = arith.subf %7, %8 : vector<2x784xf32>
    %10 = arith.truncf %9 : vector<2x784xf32> to vector<2x784xbf16>
    %c1 = arith.constant 1 : index
    %c0_5 = arith.constant 0 : index
    %c0_6 = arith.constant 0 : index
    %11 = vector.load %arg3[%c1, %c0_5, %c0_6] : memref<4x784x32xbf16, #tpu.memory_space<vmem>>, vector<1x784x32xbf16>
    %12 = vector.shape_cast %11 : vector<1x784x32xbf16> to vector<784x32xbf16>
    %cst_7 = arith.constant dense<0.000000e+00> : vector<2x32xf32>
    %13 = tpu.matmul %10, %12, %cst_7 {dimension_numbers = #tpu.dot_dimension_numbers<[1], [0], [0], [1], [0, 0, 1, 1], [], []>} : vector<2x784xbf16>, vector<784x32xbf16>, vector<2x32xf32> -> vector<2x32xf32>
    %14 = arith.addf %5, %13 : vector<2x32xf32>
    %c0_8 = arith.constant 0 : index
    %c3 = arith.constant 3 : index
    %15 = memref.load %arg1[%c0_8, %c3] : memref<3x5xf32, #tpu.memory_space<smem>>
    %16 = arith.mulf %1, %9 : vector<2x784xf32>
    %17 = vector.broadcast %15 : f32 to vector<2x784xf32>
    %18 = arith.mulf %17, %1 : vector<2x784xf32>
    %19 = arith.subf %16, %18 : vector<2x784xf32>
    %20 = arith.truncf %19 : vector<2x784xf32> to vector<2x784xbf16>
    %c2_9 = arith.constant 2 : index
    %c0_10 = arith.constant 0 : index
    %c0_11 = arith.constant 0 : index
    %21 = vector.load %arg3[%c2_9, %c0_10, %c0_11] : memref<4x784x32xbf16, #tpu.memory_space<vmem>>, vector<1x784x32xbf16>
    %22 = vector.shape_cast %21 : vector<1x784x32xbf16> to vector<784x32xbf16>
    %cst_12 = arith.constant dense<0.000000e+00> : vector<2x32xf32>
    %23 = tpu.matmul %20, %22, %cst_12 {dimension_numbers = #tpu.dot_dimension_numbers<[1], [0], [0], [1], [0, 0, 1, 1], [], []>} : vector<2x784xbf16>, vector<784x32xbf16>, vector<2x32xf32> -> vector<2x32xf32>
    %24 = arith.addf %14, %23 : vector<2x32xf32>
    %c0_13 = arith.constant 0 : index
    %c4 = arith.constant 4 : index
    %25 = memref.load %arg1[%c0_13, %c4] : memref<3x5xf32, #tpu.memory_space<smem>>
    %26 = arith.mulf %1, %19 : vector<2x784xf32>
    %27 = vector.broadcast %25 : f32 to vector<2x784xf32>
    %28 = arith.mulf %27, %9 : vector<2x784xf32>
    %29 = arith.subf %26, %28 : vector<2x784xf32>
    %30 = arith.truncf %29 : vector<2x784xf32> to vector<2x784xbf16>
    %c3_14 = arith.constant 3 : index
    %c0_15 = arith.constant 0 : index
    %c0_16 = arith.constant 0 : index
    %31 = vector.load %arg3[%c3_14, %c0_15, %c0_16] : memref<4x784x32xbf16, #tpu.memory_space<vmem>>, vector<1x784x32xbf16>
    %32 = vector.shape_cast %31 : vector<1x784x32xbf16> to vector<784x32xbf16>
    %cst_17 = arith.constant dense<0.000000e+00> : vector<2x32xf32>
    %33 = tpu.matmul %30, %32, %cst_17 {dimension_numbers = #tpu.dot_dimension_numbers<[1], [0], [0], [1], [0, 0, 1, 1], [], []>} : vector<2x784xbf16>, vector<784x32xbf16>, vector<2x32xf32> -> vector<2x32xf32>
    %34 = arith.addf %24, %33 : vector<2x32xf32>
    %c0_18 = arith.constant 0 : index
    %c0_19 = arith.constant 0 : index
    %35 = vector.load %arg4[%c0_18, %c0_19] : memref<1x32xf32, #tpu.memory_space<vmem>>, vector<1x32xf32>
    %36 = vector.broadcast %35 : vector<1x32xf32> to vector<2x32xf32>
    %37 = arith.addf %34, %36 : vector<2x32xf32>
    %cst_20 = arith.constant dense<0.000000e+00> : vector<2xf32>
    %38 = vector.multi_reduction <add>, %37, %cst_20 [1] : vector<2x32xf32> to vector<2xf32>
    %39 = vector.shape_cast %38 : vector<2xf32> to vector<2x1xf32>
    %cst_21 = arith.constant 3.200000e+01 : f32
    %40 = vector.broadcast %cst_21 : f32 to vector<2x1xf32>
    %41 = arith.divf %39, %40 : vector<2x1xf32>
    %42 = vector.broadcast %41 : vector<2x1xf32> to vector<2x32xf32>
    %43 = arith.subf %37, %42 : vector<2x32xf32>
    %44 = arith.mulf %43, %43 : vector<2x32xf32>
    %cst_22 = arith.constant dense<0.000000e+00> : vector<2xf32>
    %45 = vector.multi_reduction <add>, %44, %cst_22 [1] : vector<2x32xf32> to vector<2xf32>
    %46 = vector.shape_cast %45 : vector<2xf32> to vector<2x1xf32>
    %cst_23 = arith.constant 3.200000e+01 : f32
    %47 = vector.broadcast %cst_23 : f32 to vector<2x1xf32>
    %48 = arith.divf %46, %47 : vector<2x1xf32>
    %49 = vector.broadcast %41 : vector<2x1xf32> to vector<2x32xf32>
    %50 = arith.subf %37, %49 : vector<2x32xf32>
    %cst_24 = arith.constant 9.99999974E-6 : f32
    %51 = vector.broadcast %cst_24 : f32 to vector<2x1xf32>
    %52 = arith.addf %48, %51 : vector<2x1xf32>
    %53 = math.rsqrt %52 : vector<2x1xf32>
    %54 = vector.broadcast %53 : vector<2x1xf32> to vector<2x32xf32>
    %55 = arith.mulf %50, %54 : vector<2x32xf32>
    %c0_25 = arith.constant 0 : index
    %c0_26 = arith.constant 0 : index
    %56 = vector.load %arg5[%c0_25, %c0_26] : memref<1x32xf32, #tpu.memory_space<vmem>>, vector<1x32xf32>
    %57 = vector.broadcast %56 : vector<1x32xf32> to vector<2x32xf32>
    %58 = arith.mulf %55, %57 : vector<2x32xf32>
    %c0_27 = arith.constant 0 : index
    %c0_28 = arith.constant 0 : index
    %59 = vector.load %arg6[%c0_27, %c0_28] : memref<1x32xf32, #tpu.memory_space<vmem>>, vector<1x32xf32>
    %60 = vector.broadcast %59 : vector<1x32xf32> to vector<2x32xf32>
    %61 = arith.addf %58, %60 : vector<2x32xf32>
    %62 = math.tanh %61 : vector<2x32xf32>
    %63 = arith.truncf %62 : vector<2x32xf32> to vector<2x32xbf16>
    %c0_29 = arith.constant 0 : index
    %c0_30 = arith.constant 0 : index
    %c0_31 = arith.constant 0 : index
    %64 = vector.load %arg7[%c0_29, %c0_30, %c0_31] : memref<4x32x16xbf16, #tpu.memory_space<vmem>>, vector<1x32x16xbf16>
    %65 = vector.shape_cast %64 : vector<1x32x16xbf16> to vector<32x16xbf16>
    %cst_32 = arith.constant dense<0.000000e+00> : vector<2x16xf32>
    %66 = tpu.matmul %63, %65, %cst_32 {dimension_numbers = #tpu.dot_dimension_numbers<[1], [0], [0], [1], [0, 0, 1, 1], [], []>} : vector<2x32xbf16>, vector<32x16xbf16>, vector<2x16xf32> -> vector<2x16xf32>
    %c1_33 = arith.constant 1 : index
    %c2_34 = arith.constant 2 : index
    %67 = memref.load %arg1[%c1_33, %c2_34] : memref<3x5xf32, #tpu.memory_space<smem>>
    %68 = arith.mulf %62, %62 : vector<2x32xf32>
    %69 = vector.broadcast %67 : f32 to vector<2x32xf32>
    %70 = arith.subf %68, %69 : vector<2x32xf32>
    %71 = arith.truncf %70 : vector<2x32xf32> to vector<2x32xbf16>
    %c1_35 = arith.constant 1 : index
    %c0_36 = arith.constant 0 : index
    %c0_37 = arith.constant 0 : index
    %72 = vector.load %arg7[%c1_35, %c0_36, %c0_37] : memref<4x32x16xbf16, #tpu.memory_space<vmem>>, vector<1x32x16xbf16>
    %73 = vector.shape_cast %72 : vector<1x32x16xbf16> to vector<32x16xbf16>
    %cst_38 = arith.constant dense<0.000000e+00> : vector<2x16xf32>
    %74 = tpu.matmul %71, %73, %cst_38 {dimension_numbers = #tpu.dot_dimension_numbers<[1], [0], [0], [1], [0, 0, 1, 1], [], []>} : vector<2x32xbf16>, vector<32x16xbf16>, vector<2x16xf32> -> vector<2x16xf32>
    %75 = arith.addf %66, %74 : vector<2x16xf32>
    %c1_39 = arith.constant 1 : index
    %c3_40 = arith.constant 3 : index
    %76 = memref.load %arg1[%c1_39, %c3_40] : memref<3x5xf32, #tpu.memory_space<smem>>
    %77 = arith.mulf %62, %70 : vector<2x32xf32>
    %78 = vector.broadcast %76 : f32 to vector<2x32xf32>
    %79 = arith.mulf %78, %62 : vector<2x32xf32>
    %80 = arith.subf %77, %79 : vector<2x32xf32>
    %81 = arith.truncf %80 : vector<2x32xf32> to vector<2x32xbf16>
    %c2_41 = arith.constant 2 : index
    %c0_42 = arith.constant 0 : index
    %c0_43 = arith.constant 0 : index
    %82 = vector.load %arg7[%c2_41, %c0_42, %c0_43] : memref<4x32x16xbf16, #tpu.memory_space<vmem>>, vector<1x32x16xbf16>
    %83 = vector.shape_cast %82 : vector<1x32x16xbf16> to vector<32x16xbf16>
    %cst_44 = arith.constant dense<0.000000e+00> : vector<2x16xf32>
    %84 = tpu.matmul %81, %83, %cst_44 {dimension_numbers = #tpu.dot_dimension_numbers<[1], [0], [0], [1], [0, 0, 1, 1], [], []>} : vector<2x32xbf16>, vector<32x16xbf16>, vector<2x16xf32> -> vector<2x16xf32>
    %85 = arith.addf %75, %84 : vector<2x16xf32>
    %c1_45 = arith.constant 1 : index
    %c4_46 = arith.constant 4 : index
    %86 = memref.load %arg1[%c1_45, %c4_46] : memref<3x5xf32, #tpu.memory_space<smem>>
    %87 = arith.mulf %62, %80 : vector<2x32xf32>
    %88 = vector.broadcast %86 : f32 to vector<2x32xf32>
    %89 = arith.mulf %88, %70 : vector<2x32xf32>
    %90 = arith.subf %87, %89 : vector<2x32xf32>
    %91 = arith.truncf %90 : vector<2x32xf32> to vector<2x32xbf16>
    %c3_47 = arith.constant 3 : index
    %c0_48 = arith.constant 0 : index
    %c0_49 = arith.constant 0 : index
    %92 = vector.load %arg7[%c3_47, %c0_48, %c0_49] : memref<4x32x16xbf16, #tpu.memory_space<vmem>>, vector<1x32x16xbf16>
    %93 = vector.shape_cast %92 : vector<1x32x16xbf16> to vector<32x16xbf16>
    %cst_50 = arith.constant dense<0.000000e+00> : vector<2x16xf32>
    %94 = tpu.matmul %91, %93, %cst_50 {dimension_numbers = #tpu.dot_dimension_numbers<[1], [0], [0], [1], [0, 0, 1, 1], [], []>} : vector<2x32xbf16>, vector<32x16xbf16>, vector<2x16xf32> -> vector<2x16xf32>
    %95 = arith.addf %85, %94 : vector<2x16xf32>
    %c0_51 = arith.constant 0 : index
    %c0_52 = arith.constant 0 : index
    %96 = vector.load %arg8[%c0_51, %c0_52] : memref<1x16xf32, #tpu.memory_space<vmem>>, vector<1x16xf32>
    %97 = vector.broadcast %96 : vector<1x16xf32> to vector<2x16xf32>
    %98 = arith.addf %95, %97 : vector<2x16xf32>
    %cst_53 = arith.constant dense<0.000000e+00> : vector<2xf32>
    %99 = vector.multi_reduction <add>, %98, %cst_53 [1] : vector<2x16xf32> to vector<2xf32>
    %100 = vector.shape_cast %99 : vector<2xf32> to vector<2x1xf32>
    %cst_54 = arith.constant 1.600000e+01 : f32
    %101 = vector.broadcast %cst_54 : f32 to vector<2x1xf32>
    %102 = arith.divf %100, %101 : vector<2x1xf32>
    %103 = vector.broadcast %102 : vector<2x1xf32> to vector<2x16xf32>
    %104 = arith.subf %98, %103 : vector<2x16xf32>
    %105 = arith.mulf %104, %104 : vector<2x16xf32>
    %cst_55 = arith.constant dense<0.000000e+00> : vector<2xf32>
    %106 = vector.multi_reduction <add>, %105, %cst_55 [1] : vector<2x16xf32> to vector<2xf32>
    %107 = vector.shape_cast %106 : vector<2xf32> to vector<2x1xf32>
    %cst_56 = arith.constant 1.600000e+01 : f32
    %108 = vector.broadcast %cst_56 : f32 to vector<2x1xf32>
    %109 = arith.divf %107, %108 : vector<2x1xf32>
    %110 = vector.broadcast %102 : vector<2x1xf32> to vector<2x16xf32>
    %111 = arith.subf %98, %110 : vector<2x16xf32>
    %cst_57 = arith.constant 9.99999974E-6 : f32
    %112 = vector.broadcast %cst_57 : f32 to vector<2x1xf32>
    %113 = arith.addf %109, %112 : vector<2x1xf32>
    %114 = math.rsqrt %113 : vector<2x1xf32>
    %115 = vector.broadcast %114 : vector<2x1xf32> to vector<2x16xf32>
    %116 = arith.mulf %111, %115 : vector<2x16xf32>
    %c0_58 = arith.constant 0 : index
    %c0_59 = arith.constant 0 : index
    %117 = vector.load %arg9[%c0_58, %c0_59] : memref<1x16xf32, #tpu.memory_space<vmem>>, vector<1x16xf32>
    %118 = vector.broadcast %117 : vector<1x16xf32> to vector<2x16xf32>
    %119 = arith.mulf %116, %118 : vector<2x16xf32>
    %c0_60 = arith.constant 0 : index
    %c0_61 = arith.constant 0 : index
    %120 = vector.load %arg10[%c0_60, %c0_61] : memref<1x16xf32, #tpu.memory_space<vmem>>, vector<1x16xf32>
    %121 = vector.broadcast %120 : vector<1x16xf32> to vector<2x16xf32>
    %122 = arith.addf %119, %121 : vector<2x16xf32>
    %123 = math.tanh %122 : vector<2x16xf32>
    %124 = arith.truncf %123 : vector<2x16xf32> to vector<2x16xbf16>
    %c0_62 = arith.constant 0 : index
    %c0_63 = arith.constant 0 : index
    %c0_64 = arith.constant 0 : index
    %125 = vector.load %arg11[%c0_62, %c0_63, %c0_64] : memref<4x16x10xbf16, #tpu.memory_space<vmem>>, vector<1x16x10xbf16>
    %126 = vector.shape_cast %125 : vector<1x16x10xbf16> to vector<16x10xbf16>
    %cst_65 = arith.constant dense<0.000000e+00> : vector<2x10xf32>
    %127 = tpu.matmul %124, %126, %cst_65 {dimension_numbers = #tpu.dot_dimension_numbers<[1], [0], [0], [1], [0, 0, 1, 1], [], []>} : vector<2x16xbf16>, vector<16x10xbf16>, vector<2x10xf32> -> vector<2x10xf32>
    %c2_66 = arith.constant 2 : index
    %c2_67 = arith.constant 2 : index
    %128 = memref.load %arg1[%c2_66, %c2_67] : memref<3x5xf32, #tpu.memory_space<smem>>
    %129 = arith.mulf %123, %123 : vector<2x16xf32>
    %130 = vector.broadcast %128 : f32 to vector<2x16xf32>
    %131 = arith.subf %129, %130 : vector<2x16xf32>
    %132 = arith.truncf %131 : vector<2x16xf32> to vector<2x16xbf16>
    %c1_68 = arith.constant 1 : index
    %c0_69 = arith.constant 0 : index
    %c0_70 = arith.constant 0 : index
    %133 = vector.load %arg11[%c1_68, %c0_69, %c0_70] : memref<4x16x10xbf16, #tpu.memory_space<vmem>>, vector<1x16x10xbf16>
    %134 = vector.shape_cast %133 : vector<1x16x10xbf16> to vector<16x10xbf16>
    %cst_71 = arith.constant dense<0.000000e+00> : vector<2x10xf32>
    %135 = tpu.matmul %132, %134, %cst_71 {dimension_numbers = #tpu.dot_dimension_numbers<[1], [0], [0], [1], [0, 0, 1, 1], [], []>} : vector<2x16xbf16>, vector<16x10xbf16>, vector<2x10xf32> -> vector<2x10xf32>
    %136 = arith.addf %127, %135 : vector<2x10xf32>
    %c2_72 = arith.constant 2 : index
    %c3_73 = arith.constant 3 : index
    %137 = memref.load %arg1[%c2_72, %c3_73] : memref<3x5xf32, #tpu.memory_space<smem>>
    %138 = arith.mulf %123, %131 : vector<2x16xf32>
    %139 = vector.broadcast %137 : f32 to vector<2x16xf32>
    %140 = arith.mulf %139, %123 : vector<2x16xf32>
    %141 = arith.subf %138, %140 : vector<2x16xf32>
    %142 = arith.truncf %141 : vector<2x16xf32> to vector<2x16xbf16>
    %c2_74 = arith.constant 2 : index
    %c0_75 = arith.constant 0 : index
    %c0_76 = arith.constant 0 : index
    %143 = vector.load %arg11[%c2_74, %c0_75, %c0_76] : memref<4x16x10xbf16, #tpu.memory_space<vmem>>, vector<1x16x10xbf16>
    %144 = vector.shape_cast %143 : vector<1x16x10xbf16> to vector<16x10xbf16>
    %cst_77 = arith.constant dense<0.000000e+00> : vector<2x10xf32>
    %145 = tpu.matmul %142, %144, %cst_77 {dimension_numbers = #tpu.dot_dimension_numbers<[1], [0], [0], [1], [0, 0, 1, 1], [], []>} : vector<2x16xbf16>, vector<16x10xbf16>, vector<2x10xf32> -> vector<2x10xf32>
    %146 = arith.addf %136, %145 : vector<2x10xf32>
    %c2_78 = arith.constant 2 : index
    %c4_79 = arith.constant 4 : index
    %147 = memref.load %arg1[%c2_78, %c4_79] : memref<3x5xf32, #tpu.memory_space<smem>>
    %148 = arith.mulf %123, %141 : vector<2x16xf32>
    %149 = vector.broadcast %147 : f32 to vector<2x16xf32>
    %150 = arith.mulf %149, %131 : vector<2x16xf32>
    %151 = arith.subf %148, %150 : vector<2x16xf32>
    %152 = arith.truncf %151 : vector<2x16xf32> to vector<2x16xbf16>
    %c3_80 = arith.constant 3 : index
    %c0_81 = arith.constant 0 : index
    %c0_82 = arith.constant 0 : index
    %153 = vector.load %arg11[%c3_80, %c0_81, %c0_82] : memref<4x16x10xbf16, #tpu.memory_space<vmem>>, vector<1x16x10xbf16>
    %154 = vector.shape_cast %153 : vector<1x16x10xbf16> to vector<16x10xbf16>
    %cst_83 = arith.constant dense<0.000000e+00> : vector<2x10xf32>
    %155 = tpu.matmul %152, %154, %cst_83 {dimension_numbers = #tpu.dot_dimension_numbers<[1], [0], [0], [1], [0, 0, 1, 1], [], []>} : vector<2x16xbf16>, vector<16x10xbf16>, vector<2x10xf32> -> vector<2x10xf32>
    %156 = arith.addf %146, %155 : vector<2x10xf32>
    %c0_84 = arith.constant 0 : index
    %c0_85 = arith.constant 0 : index
    %157 = vector.load %arg12[%c0_84, %c0_85] : memref<1x10xf32, #tpu.memory_space<vmem>>, vector<1x10xf32>
    %158 = vector.broadcast %157 : vector<1x10xf32> to vector<2x10xf32>
    %159 = arith.addf %156, %158 : vector<2x10xf32>
    %c0_86 = arith.constant 0 : index
    %c0_87 = arith.constant 0 : index
    %160 = vector.load %arg13[%c0_86, %c0_87] : memref<2x10xf32, #tpu.memory_space<vmem>>, vector<2x10xf32>
    tpu.vector_store %arg13[%c0_86, %c0_87], %159 {strides = array<i32>} : memref<2x10xf32, #tpu.memory_space<vmem>>, vector<2x10xf32>,
    return
  }
  func.func @transform_0(%arg0: i32) -> (i32, i32) {
    %c0_i32 = arith.constant 0 : i32
    %c0_i32_0 = arith.constant 0 : i32
    %c0_i32_1 = arith.constant 0 : i32
    return %c0_i32, %c0_i32_0 : i32, i32
  }
  func.func @transform_1(%arg0: i32) -> (i32, i32) {
    %c0_i32 = arith.constant 0 : i32
    %c0_i32_0 = arith.constant 0 : i32
    return %arg0, %c0_i32 : i32, i32
  }
  func.func @transform_2(%arg0: i32) -> (i32, i32, i32) {
    %c0_i32 = arith.constant 0 : i32
    %c0_i32_0 = arith.constant 0 : i32
    %c0_i32_1 = arith.constant 0 : i32
    %c0_i32_2 = arith.constant 0 : i32
    return %c0_i32, %c0_i32_0, %c0_i32_1 : i32, i32, i32
  }
  func.func @transform_3(%arg0: i32) -> (i32, i32) {
    %c0_i32 = arith.constant 0 : i32
    %c0_i32_0 = arith.constant 0 : i32
    %c0_i32_1 = arith.constant 0 : i32
    return %c0_i32, %c0_i32_0 : i32, i32
  }
  func.func @transform_4(%arg0: i32) -> (i32, i32) {
    %c0_i32 = arith.constant 0 : i32
    %c0_i32_0 = arith.constant 0 : i32
    %c0_i32_1 = arith.constant 0 : i32
    return %c0_i32, %c0_i32_0 : i32, i32
  }
  func.func @transform_5(%arg0: i32) -> (i32, i32) {
    %c0_i32 = arith.constant 0 : i32
    %c0_i32_0 = arith.constant 0 : i32
    %c0_i32_1 = arith.constant 0 : i32
    return %c0_i32, %c0_i32_0 : i32, i32
  }
  func.func @transform_6(%arg0: i32) -> (i32, i32, i32) {
    %c0_i32 = arith.constant 0 : i32
    %c0_i32_0 = arith.constant 0 : i32
    %c0_i32_1 = arith.constant 0 : i32
    %c0_i32_2 = arith.constant 0 : i32
    return %c0_i32, %c0_i32_0, %c0_i32_1 : i32, i32, i32
  }
  func.func @transform_7(%arg0: i32) -> (i32, i32) {
    %c0_i32 = arith.constant 0 : i32
    %c0_i32_0 = arith.constant 0 : i32
    %c0_i32_1 = arith.constant 0 : i32
    return %c0_i32, %c0_i32_0 : i32, i32
  }
  func.func @transform_8(%arg0: i32) -> (i32, i32) {
    %c0_i32 = arith.constant 0 : i32
    %c0_i32_0 = arith.constant 0 : i32
    %c0_i32_1 = arith.constant 0 : i32
    return %c0_i32, %c0_i32_0 : i32, i32
  }
  func.func @transform_9(%arg0: i32) -> (i32, i32) {
    %c0_i32 = arith.constant 0 : i32
    %c0_i32_0 = arith.constant 0 : i32
    %c0_i32_1 = arith.constant 0 : i32
    return %c0_i32, %c0_i32_0 : i32, i32
  }
  func.func @transform_10(%arg0: i32) -> (i32, i32, i32) {
    %c0_i32 = arith.constant 0 : i32
    %c0_i32_0 = arith.constant 0 : i32
    %c0_i32_1 = arith.constant 0 : i32
    %c0_i32_2 = arith.constant 0 : i32
    return %c0_i32, %c0_i32_0, %c0_i32_1 : i32, i32, i32
  }
  func.func @transform_11(%arg0: i32) -> (i32, i32) {
    %c0_i32 = arith.constant 0 : i32
    %c0_i32_0 = arith.constant 0 : i32
    %c0_i32_1 = arith.constant 0 : i32
    return %c0_i32, %c0_i32_0 : i32, i32
  }
  func.func @transform_12(%arg0: i32) -> (i32, i32) {
    %c0_i32 = arith.constant 0 : i32
    %c0_i32_0 = arith.constant 0 : i32
    return %arg0, %c0_i32 : i32, i32
  }
}

</mosaic_0001>

<llo_original>
// kernel: gram_forward.1
$region0: #{gram_forward.1}
  #allocation0 [shape = 'u32[]', space=smem, size = 0x4, offset = 0x4, fixed_abs, tag = 'smem constant byte address 0x4 - core index']
  #allocation1 [shape = 'u32[144,128]{1,0:T(1,128)}', space=vmem, size = 0x12000, scoped, tag = 'internal scratch']
  %s0 = inlined_call_operand.vmem [shape: f32[3,5], index: 0, kind: input, shape index: {}]
  %s1 = inlined_call_operand.vmem [shape: f32[2,784], index: 1, kind: input, shape index: {}]
  %s2 = inlined_call_operand.vmem [shape: bf16[4,784,32], index: 2, kind: input, shape index: {}]
  %s3 = inlined_call_operand.vmem [shape: f32[1,32], index: 3, kind: input, shape index: {}]
  %s4 = inlined_call_operand.vmem [shape: f32[1,32], index: 4, kind: input, shape index: {}]
  %s5 = inlined_call_operand.vmem [shape: f32[1,32], index: 5, kind: input, shape index: {}]
  %s6 = inlined_call_operand.vmem [shape: bf16[4,32,16], index: 6, kind: input, shape index: {}]
  %s7 = inlined_call_operand.vmem [shape: f32[1,16], index: 7, kind: input, shape index: {}]
  %s8 = inlined_call_operand.vmem [shape: f32[1,16], index: 8, kind: input, shape index: {}]
  %s9 = inlined_call_operand.vmem [shape: f32[1,16], index: 9, kind: input, shape index: {}]
  %s10 = inlined_call_operand.vmem [shape: bf16[4,16,10], index: 10, kind: input, shape index: {}]
  %s11 = inlined_call_operand.vmem [shape: f32[1,10], index: 11, kind: input, shape index: {}]
  %s12 = inlined_call_operand.hbm [shape: f32[2,10], index: 12, kind: output, shape index: {}]
  %s13 = sld [smem:[#allocation0]]
  $region62: #{gram_forward.1} parent=0
    _
  %s15 = ssub.s32 1, %s13
  %s16 = scalar_select 0, %s15, %s13
  $region1: #{gram_forward.1} parent=0
    #allocation2 [shape = 'u8[2048]{0}', space=smem, size = 0x800, scoped, tag = 'input window, operand 0, single buffered']
    #allocation3 [shape = 's32[1]{0}', space=sflag, size = 0x4, scoped, tag = 'scoped memory for gram_forward.1']
    #allocation4 [shape = 's32[1]{0}', space=sflag, size = 0x4, scoped, tag = 'scoped memory for gram_forward.1']
    #allocation5 [shape = 'u8[1024]{0}', space=vmem, size = 0x400, scoped, tag = 'output window, operand 0, single buffered']
    %17 = vsyncpa [#allocation4], 0
    %18 = vsyncpa [#allocation3], 0
    // Predicated region
    $region2: #{gram_forward.1} parent=1 // pred_check
      _
    $region3: #{gram_forward.1} parent=1 // pred_check_branch
      %20 = sbr.rel (0) target = $region5
    $region4: #{gram_forward.1} parent=1 // pred_region
      %s22 = ssub.s32 64, 64
      %23 = vsyncadd [#allocation4], %s22
      %s25 = sshll.u32 %s0, 4
      %s26 = int_to_ptr.vmem [resolvable:$true] %s25
      %28 = dma.vmem_to_smem %s26, 64, [#allocation2], [#allocation4]
    $region5: #{gram_forward.1} parent=1 // pred_fallthru
      _
    // Predicated region
    $region6: #{gram_forward.1} parent=1 // pred_check
      _
    $region7: #{gram_forward.1} parent=1 // pred_check_branch
      %30 = sbr.rel (0) target = $region9
    $region8: #{gram_forward.1} parent=1 // pred_region
      _
    $region9: #{gram_forward.1} parent=1 // pred_fallthru
      _
    // Predicated region
    $region10: #{gram_forward.1} parent=1 // pred_check
      _
    $region11: #{gram_forward.1} parent=1 // pred_check_branch
      %32 = sbr.rel (0) target = $region13
    $region12: #{gram_forward.1} parent=1 // pred_region
      _
    $region13: #{gram_forward.1} parent=1 // pred_fallthru
      _
    // Predicated region
    $region14: #{gram_forward.1} parent=1 // pred_check
      _
    $region15: #{gram_forward.1} parent=1 // pred_check_branch
      %34 = sbr.rel (0) target = $region17
    $region16: #{gram_forward.1} parent=1 // pred_region
      _
    $region17: #{gram_forward.1} parent=1 // pred_fallthru
      _
    // Predicated region
    $region18: #{gram_forward.1} parent=1 // pred_check
      _
    $region19: #{gram_forward.1} parent=1 // pred_check_branch
      %36 = sbr.rel (0) target = $region21
    $region20: #{gram_forward.1} parent=1 // pred_region
      _
    $region21: #{gram_forward.1} parent=1 // pred_fallthru
      _
    // Predicated region
    $region22: #{gram_forward.1} parent=1 // pred_check
      _
    $region23: #{gram_forward.1} parent=1 // pred_check_branch
      %38 = sbr.rel (0) target = $region25
    $region24: #{gram_forward.1} parent=1 // pred_region
      _
    $region25: #{gram_forward.1} parent=1 // pred_fallthru
      _
    // Predicated region
    $region26: #{gram_forward.1} parent=1 // pred_check
      _
    $region27: #{gram_forward.1} parent=1 // pred_check_branch
      %40 = sbr.rel (0) target = $region29
    $region28: #{gram_forward.1} parent=1 // pred_region
      _
    $region29: #{gram_forward.1} parent=1 // pred_fallthru
      _
    // Predicated region
    $region30: #{gram_forward.1} parent=1 // pred_check
      _
    $region31: #{gram_forward.1} parent=1 // pred_check_branch
      %42 = sbr.rel (0) target = $region33
    $region32: #{gram_forward.1} parent=1 // pred_region
      _
    $region33: #{gram_forward.1} parent=1 // pred_fallthru
      _
    // Predicated region
    $region34: #{gram_forward.1} parent=1 // pred_check
      _
    $region35: #{gram_forward.1} parent=1 // pred_check_branch
      %44 = sbr.rel (0) target = $region37
    $region36: #{gram_forward.1} parent=1 // pred_region
      _
    $region37: #{gram_forward.1} parent=1 // pred_fallthru
      _
    // Predicated region
    $region38: #{gram_forward.1} parent=1 // pred_check
      _
    $region39: #{gram_forward.1} parent=1 // pred_check_branch
      %46 = sbr.rel (0) target = $region41
    $region40: #{gram_forward.1} parent=1 // pred_region
      _
    $region41: #{gram_forward.1} parent=1 // pred_fallthru
      _
    // Predicated region
    $region42: #{gram_forward.1} parent=1 // pred_check
      _
    $region43: #{gram_forward.1} parent=1 // pred_check_branch
      %48 = sbr.rel (0) target = $region45
    $region44: #{gram_forward.1} parent=1 // pred_region
      _
    $region45: #{gram_forward.1} parent=1 // pred_fallthru
      _
    // Predicated region
    $region46: #{gram_forward.1} parent=1 // pred_check
      _
    $region47: #{gram_forward.1} parent=1 // pred_check_branch
      %50 = sbr.rel (0) target = $region49
    $region48: #{gram_forward.1} parent=1 // pred_region
      _
    $region49: #{gram_forward.1} parent=1 // pred_fallthru
      _
    // Predicated region
    $region50: #{gram_forward.1} parent=1 // pred_check
      _
    $region51: #{gram_forward.1} parent=1 // pred_check_branch
      %52 = sbr.rel (0) target = $region53
    $region52: #{gram_forward.1} parent=1 // pred_region
      %53 = dma.done [#allocation4], 64
    $region53: #{gram_forward.1} parent=1 // pred_fallthru
      _
    %54 = sfence
    %v56 = vld [vmem:[%s1] sm:$0xff]
    %v57 = vld [vmem:[%s1 + $0x8] sm:$0x3f]
    %v58 = vtanh.pop %v56
    %v59 = vtanh.pop %v57
    %v62 = vcombine.high %v58, %v58
    %v64 = vunpack.c.l.s4 1983009808
    %v65 = vunpack.c.0.s8 %v64
    %v66 = vlaneseq
    %v67 = vshrl.u32 %v66, 7
    %v68 = vsub.s32 %v65, %v67
    %v69 = vrot.slane %v58, %v68
    %v71 = vunpack.c.l.s4 1983009808
    %v72 = vunpack.c.0.s8 %v71
    %v73 = vlaneseq
    %v74 = vshrl.u32 %v73, 7
    %v75 = vsub.s32 %v72, %v74
    %v76 = vrot.slane %v62, %v75
    %v77 = vcombine.high %v69, %v69
    %v78 = vcombine.high %v76, %v76
    %v79 = vcombine.high %v59, %v59
    %v81 = vunpack.c.l.s4 1983009808
    %v82 = vunpack.c.0.s8 %v81
    %v83 = vlaneseq
    %v84 = vshrl.u32 %v83, 7
    %v85 = vsub.s32 %v82, %v84
    %v86 = vrot.slane %v59, %v85
    %v88 = vunpack.c.l.s4 1983009808
    %v89 = vunpack.c.0.s8 %v88
    %v90 = vlaneseq
    %v91 = vshrl.u32 %v90, 7
    %v92 = vsub.s32 %v89, %v91
    %v93 = vrot.slane %v79, %v92
    %v94 = vcombine.high %v86, %v86
    %v102 = vpack.c.bf16 %v69, %v69
    %v103 = vpack.c.bf16 %v77, %v77
    %v104 = vpack.c.bf16 %v76, %v76
    %v105 = vpack.c.bf16 %v78, %v78
    %v106 = vpack.c.bf16 %v86, %v86
    %v107 = vpack.c.bf16 %v94, %v94
    %v108 = vpack.c.bf16 %v93, %v93
    %v109 = vld [vmem:[%s2] sm:$0xf]
    %v110 = vld [vmem:[%s2 + $0x4] sm:$0xf]
    %v111 = vld [vmem:[%s2 + $0x8] sm:$0xf]
    %v112 = vld [vmem:[%s2 + $0xc] sm:$0xf]
    %v113 = vld [vmem:[%s2 + $0x10] sm:$0xf]
    %v114 = vld [vmem:[%s2 + $0x14] sm:$0xf]
    %v115 = vld [vmem:[%s2 + $0x18] sm:$0xf]
    %v116 = vld [vmem:[%s2 + $0x1c] sm:$0xf]
    %v117 = vld [vmem:[%s2 + $0x20] sm:$0xf]
    %v118 = vld [vmem:[%s2 + $0x24] sm:$0xf]
    %v119 = vld [vmem:[%s2 + $0x28] sm:$0xf]
    %v120 = vld [vmem:[%s2 + $0x2c] sm:$0xf]
    %v121 = vld [vmem:[%s2 + $0x30] sm:$0xf]
    %v122 = vld [vmem:[%s2 + $0x34] sm:$0xf]
    %v123 = vld [vmem:[%s2 + $0x38] sm:$0xf]
    %v124 = vld [vmem:[%s2 + $0x3c] sm:$0xf]
    %v125 = vld [vmem:[%s2 + $0x40] sm:$0xf]
    %v126 = vld [vmem:[%s2 + $0x44] sm:$0xf]
    %v127 = vld [vmem:[%s2 + $0x48] sm:$0xf]
    %v128 = vld [vmem:[%s2 + $0x4c] sm:$0xf]
    %v129 = vld [vmem:[%s2 + $0x50] sm:$0xf]
    %v130 = vld [vmem:[%s2 + $0x54] sm:$0xf]
    %v131 = vld [vmem:[%s2 + $0x58] sm:$0xf]
    %v132 = vld [vmem:[%s2 + $0x5c] sm:$0xf]
    %v133 = vld [vmem:[%s2 + $0x60] sm:$0xf]
    %v134 = vld [vmem:[%s2 + $0x64] sm:$0xf]
    %v135 = vld [vmem:[%s2 + $0x68] sm:$0xf]
    %v136 = vld [vmem:[%s2 + $0x6c] sm:$0xf]
    %v137 = vld [vmem:[%s2 + $0x70] sm:$0xf]
    %v138 = vld [vmem:[%s2 + $0x74] sm:$0xf]
    %v139 = vld [vmem:[%s2 + $0x78] sm:$0xf]
    %v140 = vld [vmem:[%s2 + $0x7c] sm:$0xf]
    %v141 = vld [vmem:[%s2 + $0x80] sm:$0xf]
    %v142 = vld [vmem:[%s2 + $0x84] sm:$0xf]
    %v143 = vld [vmem:[%s2 + $0x88] sm:$0xf]
    %v144 = vld [vmem:[%s2 + $0x8c] sm:$0xf]
    %v145 = vld [vmem:[%s2 + $0x90] sm:$0xf]
    %v146 = vld [vmem:[%s2 + $0x94] sm:$0xf]
    %v147 = vld [vmem:[%s2 + $0x98] sm:$0xf]
    %v148 = vld [vmem:[%s2 + $0x9c] sm:$0xf]
    %v149 = vld [vmem:[%s2 + $0xa0] sm:$0xf]
    %v150 = vld [vmem:[%s2 + $0xa4] sm:$0xf]
    %v151 = vld [vmem:[%s2 + $0xa8] sm:$0xf]
    %v152 = vld [vmem:[%s2 + $0xac] sm:$0xf]
    %v153 = vld [vmem:[%s2 + $0xb0] sm:$0xf]
    %v154 = vld [vmem:[%s2 + $0xb4] sm:$0xf]
    %v155 = vld [vmem:[%s2 + $0xb8] sm:$0xf]
    %v156 = vld [vmem:[%s2 + $0xbc] sm:$0xf]
    %v157 = vld [vmem:[%s2 + $0xc0] sm:$0xf]
    %v158 = vld [vmem:[%s2 + $0xc4] sm:$0xf]
    %v159 = vld [vmem:[%s2 + $0xc8] sm:$0xf]
    %v160 = vld [vmem:[%s2 + $0xcc] sm:$0xf]
    %v161 = vld [vmem:[%s2 + $0xd0] sm:$0xf]
    %v162 = vld [vmem:[%s2 + $0xd4] sm:$0xf]
    %v163 = vld [vmem:[%s2 + $0xd8] sm:$0xf]
    %v164 = vld [vmem:[%s2 + $0xdc] sm:$0xf]
    %v165 = vld [vmem:[%s2 + $0xe0] sm:$0xf]
    %v166 = vld [vmem:[%s2 + $0xe4] sm:$0xf]
    %v167 = vld [vmem:[%s2 + $0xe8] sm:$0xf]
    %v168 = vld [vmem:[%s2 + $0xec] sm:$0xf]
    %v169 = vld [vmem:[%s2 + $0xf0] sm:$0xf]
    %v170 = vld [vmem:[%s2 + $0xf4] sm:$0xf]
    %v171 = vld [vmem:[%s2 + $0xf8] sm:$0xf]
    %v172 = vld [vmem:[%s2 + $0xfc] sm:$0xf]
    %v173 = vld [vmem:[%s2 + $0x100] sm:$0xf]
    %v174 = vld [vmem:[%s2 + $0x104] sm:$0xf]
    %v175 = vld [vmem:[%s2 + $0x108] sm:$0xf]
    %v176 = vld [vmem:[%s2 + $0x10c] sm:$0xf]
    %v177 = vld [vmem:[%s2 + $0x110] sm:$0xf]
    %v178 = vld [vmem:[%s2 + $0x114] sm:$0xf]
    %v179 = vld [vmem:[%s2 + $0x118] sm:$0xf]
    %v180 = vld [vmem:[%s2 + $0x11c] sm:$0xf]
    %v181 = vld [vmem:[%s2 + $0x120] sm:$0xf]
    %v182 = vld [vmem:[%s2 + $0x124] sm:$0xf]
    %v183 = vld [vmem:[%s2 + $0x128] sm:$0xf]
    %v184 = vld [vmem:[%s2 + $0x12c] sm:$0xf]
    %v185 = vld [vmem:[%s2 + $0x130] sm:$0xf]
    %v186 = vld [vmem:[%s2 + $0x134] sm:$0xf]
    %v187 = vld [vmem:[%s2 + $0x138] sm:$0xf]
    %v188 = vld [vmem:[%s2 + $0x13c] sm:$0xf]
    %v189 = vld [vmem:[%s2 + $0x140] sm:$0xf]
    %v190 = vld [vmem:[%s2 + $0x144] sm:$0xf]
    %v191 = vld [vmem:[%s2 + $0x148] sm:$0xf]
    %v192 = vld [vmem:[%s2 + $0x14c] sm:$0xf]
    %v193 = vld [vmem:[%s2 + $0x150] sm:$0xf]
    %v194 = vld [vmem:[%s2 + $0x154] sm:$0xf]
    %v195 = vld [vmem:[%s2 + $0x158] sm:$0xf]
    %v196 = vld [vmem:[%s2 + $0x15c] sm:$0xf]
    %v197 = vld [vmem:[%s2 + $0x160] sm:$0xf]
    %v198 = vld [vmem:[%s2 + $0x164] sm:$0xf]
    %v199 = vld [vmem:[%s2 + $0x168] sm:$0xf]
    %v200 = vld [vmem:[%s2 + $0x16c] sm:$0xf]
    %v201 = vld [vmem:[%s2 + $0x170] sm:$0xf]
    %v202 = vld [vmem:[%s2 + $0x174] sm:$0xf]
    %v203 = vld [vmem:[%s2 + $0x178] sm:$0xf]
    %v204 = vld [vmem:[%s2 + $0x17c] sm:$0xf]
    %v205 = vld [vmem:[%s2 + $0x180] sm:$0xf]
    %v206 = vld [vmem:[%s2 + $0x184] sm:$0xf]
    %s207 = sld [smem:[#allocation2 + $0x2]]
    %v208 = vmul.f32 %v58, %v58
    %v209 = vmul.f32 %v59, %v59
    %v210 = vstv %s207
    %v211 = vsub.f32 %v208, %v210
    %v212 = vsub.f32 %v209, %v210
    %v215 = vcombine.high %v211, %v211
    %v217 = vunpack.c.l.s4 1983009808
    %v218 = vunpack.c.0.s8 %v217
    %v219 = vlaneseq
    %v220 = vshrl.u32 %v219, 7
    %v221 = vsub.s32 %v218, %v220
    %v222 = vrot.slane %v211, %v221
    %v224 = vunpack.c.l.s4 1983009808
    %v225 = vunpack.c.0.s8 %v224
    %v226 = vlaneseq
    %v227 = vshrl.u32 %v226, 7
    %v228 = vsub.s32 %v225, %v227
    %v229 = vrot.slane %v215, %v228
    %v230 = vcombine.high %v222, %v222
    %v231 = vcombine.high %v229, %v229
    %v232 = vcombine.high %v212, %v212
    %v234 = vunpack.c.l.s4 1983009808
    %v235 = vunpack.c.0.s8 %v234
    %v236 = vlaneseq
    %v237 = vshrl.u32 %v236, 7
    %v238 = vsub.s32 %v235, %v237
    %v239 = vrot.slane %v212, %v238
    %v241 = vunpack.c.l.s4 1983009808
    %v242 = vunpack.c.0.s8 %v241
    %v243 = vlaneseq
    %v244 = vshrl.u32 %v243, 7
    %v245 = vsub.s32 %v242, %v244
    %v246 = vrot.slane %v232, %v245
    %v247 = vcombine.high %v239, %v239
    %v255 = vpack.c.bf16 %v222, %v222
    %v256 = vpack.c.bf16 %v230, %v230
    %v257 = vpack.c.bf16 %v229, %v229
    %v258 = vpack.c.bf16 %v231, %v231
    %v259 = vpack.c.bf16 %v239, %v239
    %v260 = vpack.c.bf16 %v247, %v247
    %v261 = vpack.c.bf16 %v246, %v246
    %s262 = scalar_lea.vmem %s2, 392
    %v263 = vld [vmem:[%s262] sm:$0xf]
    %v264 = vld [vmem:[%s262 + $0x4] sm:$0xf]
    %v265 = vld [vmem:[%s262 + $0x8] sm:$0xf]
    %v266 = vld [vmem:[%s262 + $0xc] sm:$0xf]
    %v267 = vld [vmem:[%s262 + $0x10] sm:$0xf]
    %v268 = vld [vmem:[%s262 + $0x14] sm:$0xf]
    %v269 = vld [vmem:[%s262 + $0x18] sm:$0xf]
    %v270 = vld [vmem:[%s262 + $0x1c] sm:$0xf]
    %v271 = vld [vmem:[%s262 + $0x20] sm:$0xf]
    %v272 = vld [vmem:[%s262 + $0x24] sm:$0xf]
    %v273 = vld [vmem:[%s262 + $0x28] sm:$0xf]
    %v274 = vld [vmem:[%s262 + $0x2c] sm:$0xf]
    %v275 = vld [vmem:[%s262 + $0x30] sm:$0xf]
    %v276 = vld [vmem:[%s262 + $0x34] sm:$0xf]
    %v277 = vld [vmem:[%s262 + $0x38] sm:$0xf]
    %v278 = vld [vmem:[%s262 + $0x3c] sm:$0xf]
    %v279 = vld [vmem:[%s262 + $0x40] sm:$0xf]
    %v280 = vld [vmem:[%s262 + $0x44] sm:$0xf]
    %v281 = vld [vmem:[%s262 + $0x48] sm:$0xf]
    %v282 = vld [vmem:[%s262 + $0x4c] sm:$0xf]
    %v283 = vld [vmem:[%s262 + $0x50] sm:$0xf]
    %v284 = vld [vmem:[%s262 + $0x54] sm:$0xf]
    %v285 = vld [vmem:[%s262 + $0x58] sm:$0xf]
    %v286 = vld [vmem:[%s262 + $0x5c] sm:$0xf]
    %v287 = vld [vmem:[%s262 + $0x60] sm:$0xf]
    %v288 = vld [vmem:[%s262 + $0x64] sm:$0xf]
    %v289 = vld [vmem:[%s262 + $0x68] sm:$0xf]
    %v290 = vld [vmem:[%s262 + $0x6c] sm:$0xf]
    %v291 = vld [vmem:[%s262 + $0x70] sm:$0xf]
    %v292 = vld [vmem:[%s262 + $0x74] sm:$0xf]
    %v293 = vld [vmem:[%s262 + $0x78] sm:$0xf]
    %v294 = vld [vmem:[%s262 + $0x7c] sm:$0xf]
    %v295 = vld [vmem:[%s262 + $0x80] sm:$0xf]
    %v296 = vld [vmem:[%s262 + $0x84] sm:$0xf]
    %v297 = vld [vmem:[%s262 + $0x88] sm:$0xf]
    %v298 = vld [vmem:[%s262 + $0x8c] sm:$0xf]
    %v299 = vld [vmem:[%s262 + $0x90] sm:$0xf]
    %v300 = vld [vmem:[%s262 + $0x94] sm:$0xf]
    %v301 = vld [vmem:[%s262 + $0x98] sm:$0xf]
    %v302 = vld [vmem:[%s262 + $0x9c] sm:$0xf]
    %v303 = vld [vmem:[%s262 + $0xa0] sm:$0xf]
    %v304 = vld [vmem:[%s262 + $0xa4] sm:$0xf]
    %v305 = vld [vmem:[%s262 + $0xa8] sm:$0xf]
    %v306 = vld [vmem:[%s262 + $0xac] sm:$0xf]
    %v307 = vld [vmem:[%s262 + $0xb0] sm:$0xf]
    %v308 = vld [vmem:[%s262 + $0xb4] sm:$0xf]
    %v309 = vld [vmem:[%s262 + $0xb8] sm:$0xf]
    %v310 = vld [vmem:[%s262 + $0xbc] sm:$0xf]
    %v311 = vld [vmem:[%s262 + $0xc0] sm:$0xf]
    %v312 = vld [vmem:[%s262 + $0xc4] sm:$0xf]
    %v313 = vld [vmem:[%s262 + $0xc8] sm:$0xf]
    %v314 = vld [vmem:[%s262 + $0xcc] sm:$0xf]
    %v315 = vld [vmem:[%s262 + $0xd0] sm:$0xf]
    %v316 = vld [vmem:[%s262 + $0xd4] sm:$0xf]
    %v317 = vld [vmem:[%s262 + $0xd8] sm:$0xf]
    %v318 = vld [vmem:[%s262 + $0xdc] sm:$0xf]
    %v319 = vld [vmem:[%s262 + $0xe0] sm:$0xf]
    %v320 = vld [vmem:[%s262 + $0xe4] sm:$0xf]
    %v321 = vld [vmem:[%s262 + $0xe8] sm:$0xf]
    %v322 = vld [vmem:[%s262 + $0xec] sm:$0xf]
    %v323 = vld [vmem:[%s262 + $0xf0] sm:$0xf]
    %v324 = vld [vmem:[%s262 + $0xf4] sm:$0xf]
    %v325 = vld [vmem:[%s262 + $0xf8] sm:$0xf]
    %v326 = vld [vmem:[%s262 + $0xfc] sm:$0xf]
    %v327 = vld [vmem:[%s262 + $0x100] sm:$0xf]
    %v328 = vld [vmem:[%s262 + $0x104] sm:$0xf]
    %v329 = vld [vmem:[%s262 + $0x108] sm:$0xf]
    %v330 = vld [vmem:[%s262 + $0x10c] sm:$0xf]
    %v331 = vld [vmem:[%s262 + $0x110] sm:$0xf]
    %v332 = vld [vmem:[%s262 + $0x114] sm:$0xf]
    %v333 = vld [vmem:[%s262 + $0x118] sm:$0xf]
    %v334 = vld [vmem:[%s262 + $0x11c] sm:$0xf]
    %v335 = vld [vmem:[%s262 + $0x120] sm:$0xf]
    %v336 = vld [vmem:[%s262 + $0x124] sm:$0xf]
    %v337 = vld [vmem:[%s262 + $0x128] sm:$0xf]
    %v338 = vld [vmem:[%s262 + $0x12c] sm:$0xf]
    %v339 = vld [vmem:[%s262 + $0x130] sm:$0xf]
    %v340 = vld [vmem:[%s262 + $0x134] sm:$0xf]
    %v341 = vld [vmem:[%s262 + $0x138] sm:$0xf]
    %v342 = vld [vmem:[%s262 + $0x13c] sm:$0xf]
    %v343 = vld [vmem:[%s262 + $0x140] sm:$0xf]
    %v344 = vld [vmem:[%s262 + $0x144] sm:$0xf]
    %v345 = vld [vmem:[%s262 + $0x148] sm:$0xf]
    %v346 = vld [vmem:[%s262 + $0x14c] sm:$0xf]
    %v347 = vld [vmem:[%s262 + $0x150] sm:$0xf]
    %v348 = vld [vmem:[%s262 + $0x154] sm:$0xf]
    %v349 = vld [vmem:[%s262 + $0x158] sm:$0xf]
    %v350 = vld [vmem:[%s262 + $0x15c] sm:$0xf]
    %v351 = vld [vmem:[%s262 + $0x160] sm:$0xf]
    %v352 = vld [vmem:[%s262 + $0x164] sm:$0xf]
    %v353 = vld [vmem:[%s262 + $0x168] sm:$0xf]
    %v354 = vld [vmem:[%s262 + $0x16c] sm:$0xf]
    %v355 = vld [vmem:[%s262 + $0x170] sm:$0xf]
    %v356 = vld [vmem:[%s262 + $0x174] sm:$0xf]
    %v357 = vld [vmem:[%s262 + $0x178] sm:$0xf]
    %v358 = vld [vmem:[%s262 + $0x17c] sm:$0xf]
    %v359 = vld [vmem:[%s262 + $0x180] sm:$0xf]
    %v360 = vld [vmem:[%s262 + $0x184] sm:$0xf]
    %v459 = vunpack.c.l.b16 %v263
    %v460 = vunpack.c.l.b16 %v264
    %v461 = vunpack.c.l.b16 %v265
    %v462 = vunpack.c.l.b16 %v266
    %v463 = vunpack.c.l.b16 %v267
    %v464 = vunpack.c.l.b16 %v268
    %v465 = vunpack.c.l.b16 %v269
    %v466 = vunpack.c.l.b16 %v270
    %v467 = vunpack.c.l.b16 %v271
    %v468 = vunpack.c.l.b16 %v272
    %v469 = vunpack.c.l.b16 %v273
    %v470 = vunpack.c.l.b16 %v274
    %v471 = vunpack.c.l.b16 %v275
    %v472 = vunpack.c.l.b16 %v276
    %v473 = vunpack.c.l.b16 %v277
    %v474 = vunpack.c.l.b16 %v278
    %v475 = vunpack.c.l.b16 %v279
    %v476 = vunpack.c.l.b16 %v280
    %v477 = vunpack.c.l.b16 %v281
    %v478 = vunpack.c.l.b16 %v282
    %v479 = vunpack.c.l.b16 %v283
    %v480 = vunpack.c.l.b16 %v284
    %v481 = vunpack.c.l.b16 %v285
    %v482 = vunpack.c.l.b16 %v286
    %v483 = vunpack.c.l.b16 %v287
    %v484 = vunpack.c.l.b16 %v288
    %v485 = vunpack.c.l.b16 %v289
    %v486 = vunpack.c.l.b16 %v290
    %v487 = vunpack.c.l.b16 %v291
    %v488 = vunpack.c.l.b16 %v292
    %v489 = vunpack.c.l.b16 %v293
    %v490 = vunpack.c.l.b16 %v294
    %v491 = vunpack.c.l.b16 %v295
    %v492 = vunpack.c.l.b16 %v296
    %v493 = vunpack.c.l.b16 %v297
    %v494 = vunpack.c.l.b16 %v298
    %v495 = vunpack.c.l.b16 %v299
    %v496 = vunpack.c.l.b16 %v300
    %v497 = vunpack.c.l.b16 %v301
    %v498 = vunpack.c.l.b16 %v302
    %v499 = vunpack.c.l.b16 %v303
    %v500 = vunpack.c.l.b16 %v304
    %v501 = vunpack.c.l.b16 %v305
    %v502 = vunpack.c.l.b16 %v306
    %v503 = vunpack.c.l.b16 %v307
    %v504 = vunpack.c.l.b16 %v308
    %v505 = vunpack.c.l.b16 %v309
    %v506 = vunpack.c.l.b16 %v310
    %v507 = vunpack.c.l.b16 %v311
    %v508 = vunpack.c.l.b16 %v312
    %v509 = vunpack.c.l.b16 %v313
    %v510 = vunpack.c.l.b16 %v314
    %v511 = vunpack.c.l.b16 %v315
    %v512 = vunpack.c.l.b16 %v316
    %v513 = vunpack.c.l.b16 %v317
    %v514 = vunpack.c.l.b16 %v318
    %v515 = vunpack.c.l.b16 %v319
    %v516 = vunpack.c.l.b16 %v320
    %v517 = vunpack.c.l.b16 %v321
    %v518 = vunpack.c.l.b16 %v322
    %v519 = vunpack.c.l.b16 %v323
    %v520 = vunpack.c.l.b16 %v324
    %v521 = vunpack.c.l.b16 %v325
    %v522 = vunpack.c.l.b16 %v326
    %v523 = vunpack.c.l.b16 %v327
    %v524 = vunpack.c.l.b16 %v328
    %v525 = vunpack.c.l.b16 %v329
    %v526 = vunpack.c.l.b16 %v330
    %v527 = vunpack.c.l.b16 %v331
    %v528 = vunpack.c.l.b16 %v332
    %v529 = vunpack.c.l.b16 %v333
    %v530 = vunpack.c.l.b16 %v334
    %v531 = vunpack.c.l.b16 %v335
    %v532 = vunpack.c.l.b16 %v336
    %v533 = vunpack.c.l.b16 %v337
    %v534 = vunpack.c.l.b16 %v338
    %v535 = vunpack.c.l.b16 %v339
    %v536 = vunpack.c.l.b16 %v340
    %v537 = vunpack.c.l.b16 %v341
    %v538 = vunpack.c.l.b16 %v342
    %v539 = vunpack.c.l.b16 %v343
    %v540 = vunpack.c.l.b16 %v344
    %v541 = vunpack.c.l.b16 %v345
    %v542 = vunpack.c.l.b16 %v346
    %v543 = vunpack.c.l.b16 %v347
    %v544 = vunpack.c.l.b16 %v348
    %v545 = vunpack.c.l.b16 %v349
    %v546 = vunpack.c.l.b16 %v350
    %v547 = vunpack.c.l.b16 %v351
    %v548 = vunpack.c.l.b16 %v352
    %v549 = vunpack.c.l.b16 %v353
    %v550 = vunpack.c.l.b16 %v354
    %v551 = vunpack.c.l.b16 %v355
    %v552 = vunpack.c.l.b16 %v356
    %v553 = vunpack.c.l.b16 %v357
    %v554 = vunpack.c.l.b16 %v358
    %v555 = vunpack.c.l.b16 %v359
    %v556 = vunpack.c.l.b16 %v360
    %v557 = vpack.c.b16 %v460, %v459
    %v558 = vpack.c.b16 %v462, %v461
    %v559 = vpack.c.b16 %v464, %v463
    %v560 = vpack.c.b16 %v466, %v465
    %v561 = vpack.c.b16 %v468, %v467
    %v562 = vpack.c.b16 %v470, %v469
    %v563 = vpack.c.b16 %v472, %v471
    %v564 = vpack.c.b16 %v474, %v473
    %v565 = vpack.c.b16 %v476, %v475
    %v566 = vpack.c.b16 %v478, %v477
    %v567 = vpack.c.b16 %v480, %v479
    %v568 = vpack.c.b16 %v482, %v481
    %v569 = vpack.c.b16 %v484, %v483
    %v570 = vpack.c.b16 %v486, %v485
    %v571 = vpack.c.b16 %v488, %v487
    %v572 = vpack.c.b16 %v490, %v489
    %v573 = vpack.c.b16 %v492, %v491
    %v574 = vpack.c.b16 %v494, %v493
    %v575 = vpack.c.b16 %v496, %v495
    %v576 = vpack.c.b16 %v498, %v497
    %v577 = vpack.c.b16 %v500, %v499
    %v578 = vpack.c.b16 %v502, %v501
    %v579 = vpack.c.b16 %v504, %v503
    %v580 = vpack.c.b16 %v506, %v505
    %v581 = vpack.c.b16 %v508, %v507
    %v582 = vpack.c.b16 %v510, %v509
    %v583 = vpack.c.b16 %v512, %v511
    %v584 = vpack.c.b16 %v514, %v513
    %v585 = vpack.c.b16 %v516, %v515
    %v586 = vpack.c.b16 %v518, %v517
    %v587 = vpack.c.b16 %v520, %v519
    %v588 = vpack.c.b16 %v522, %v521
    %v589 = vpack.c.b16 %v524, %v523
    %v590 = vpack.c.b16 %v526, %v525
    %v591 = vpack.c.b16 %v528, %v527
    %v592 = vpack.c.b16 %v530, %v529
    %v593 = vpack.c.b16 %v532, %v531
    %v594 = vpack.c.b16 %v534, %v533
    %v595 = vpack.c.b16 %v536, %v535
    %v596 = vpack.c.b16 %v538, %v537
    %v597 = vpack.c.b16 %v540, %v539
    %v598 = vpack.c.b16 %v542, %v541
    %v599 = vpack.c.b16 %v544, %v543
    %v600 = vpack.c.b16 %v546, %v545
    %v601 = vpack.c.b16 %v548, %v547
    %v602 = vpack.c.b16 %v550, %v549
    %v603 = vpack.c.b16 %v552, %v551
    %v604 = vpack.c.b16 %v554, %v553
    %v605 = vpack.c.b16 %v556, %v555
    %vm655 = vcmask 130048
    %v657 = vsel %vm655, %v261, 0
    %659 = vmatprep.subr.bf16.mxu0 0
    %660 = vmatpush1.bf16.msra.mxu0 %v557
    %661 = vmatprep.subr.bf16.mxu0 0
    %662 = vmatpush1.bf16.msra.mxu0 %v558
    %663 = vmatprep.subr.bf16.mxu0 0
    %664 = vmatpush1.bf16.msra.mxu0 %v559
    %665 = vmatprep.subr.bf16.mxu0 0
    %666 = vmatpush1.bf16.msra.mxu0 %v560
    %667 = vmatprep.subr.bf16.mxu0 0
    %668 = vmatpush1.bf16.msra.mxu0 %v561
    %669 = vmatprep.subr.bf16.mxu0 0
    %670 = vmatpush1.bf16.msra.mxu0 %v562
    %671 = vmatprep.subr.bf16.mxu0 0
    %672 = vmatpush1.bf16.msra.mxu0 %v563
    %673 = vmatprep.subr.bf16.mxu0 0
    %674 = vmatpush1.bf16.msra.mxu0 %v564
    %675 = vmatprep.subr.bf16.mxu0 0
    %676 = vmatpush1.bf16.msra.mxu0 %v565
    %677 = vmatprep.subr.bf16.mxu0 0
    %678 = vmatpush1.bf16.msra.mxu0 %v566
    %679 = vmatprep.subr.bf16.mxu0 0
    %680 = vmatpush1.bf16.msra.mxu0 %v567
    %681 = vmatprep.subr.bf16.mxu0 0
    %682 = vmatpush1.bf16.msra.mxu0 %v568
    %683 = vmatprep.subr.bf16.mxu0 0
    %684 = vmatpush1.bf16.msra.mxu0 %v569
    %685 = vmatprep.subr.bf16.mxu0 0
    %686 = vmatpush1.bf16.msra.mxu0 %v570
    %687 = vmatprep.subr.bf16.mxu0 0
    %688 = vmatpush1.bf16.msra.mxu0 %v571
    %689 = vmatprep.subr.bf16.mxu0 0
    %690 = vmatpush1.bf16.msra.mxu0 %v572
    %691 = vmatprep.mubr.bf16.mxu0 %v256
    %692 = vmatmul.mubr.bf16.gmra.mrb[0].mxu0 %v255
    %v693 = vpop.f32.mrb[0].mxu0
    %v694 = vadd.f32 0.0, %v693
    %v695 = vpop.f32.mrb[0].mxu0
    %v696 = vpop.f32.mrb[0].mxu0
    %v697 = vpop.f32.mrb[0].mxu0
    %698 = vdwg.mxu0
    %699 = vmatprep.subr.bf16.mxu0 0
    %700 = vmatpush1.bf16.msra.mxu0 %v573
    %701 = vmatprep.subr.bf16.mxu0 0
    %702 = vmatpush1.bf16.msra.mxu0 %v574
    %703 = vmatprep.subr.bf16.mxu0 0
    %704 = vmatpush1.bf16.msra.mxu0 %v575
    %705 = vmatprep.subr.bf16.mxu0 0
    %706 = vmatpush1.bf16.msra.mxu0 %v576
    %707 = vmatprep.subr.bf16.mxu0 0
    %708 = vmatpush1.bf16.msra.mxu0 %v577
    %709 = vmatprep.subr.bf16.mxu0 0
    %710 = vmatpush1.bf16.msra.mxu0 %v578
    %711 = vmatprep.subr.bf16.mxu0 0
    %712 = vmatpush1.bf16.msra.mxu0 %v579
    %713 = vmatprep.subr.bf16.mxu0 0
    %714 = vmatpush1.bf16.msra.mxu0 %v580
    %715 = vmatprep.subr.bf16.mxu0 0
    %716 = vmatpush1.bf16.msra.mxu0 %v581
    %717 = vmatprep.subr.bf16.mxu0 0
    %718 = vmatpush1.bf16.msra.mxu0 %v582
    %719 = vmatprep.subr.bf16.mxu0 0
    %720 = vmatpush1.bf16.msra.mxu0 %v583
    %721 = vmatprep.subr.bf16.mxu0 0
    %722 = vmatpush1.bf16.msra.mxu0 %v584
    %723 = vmatprep.subr.bf16.mxu0 0
    %724 = vmatpush1.bf16.msra.mxu0 %v585
    %725 = vmatprep.subr.bf16.mxu0 0
    %726 = vmatpush1.bf16.msra.mxu0 %v586
    %727 = vmatprep.subr.bf16.mxu0 0
    %728 = vmatpush1.bf16.msra.mxu0 %v587
    %729 = vmatprep.subr.bf16.mxu0 0
    %730 = vmatpush1.bf16.msra.mxu0 %v588
    %731 = vmatprep.mubr.bf16.mxu0 %v258
    %732 = vmatmul.mubr.bf16.gmra.mrb[0].mxu0 %v257
    %v733 = vpop.f32.mrb[0].mxu0
    %v734 = vadd.f32 %v694, %v733
    %v735 = vpop.f32.mrb[0].mxu0
    %v736 = vpop.f32.mrb[0].mxu0
    %v737 = vpop.f32.mrb[0].mxu0
    %738 = vdwg.mxu0
    %739 = vmatprep.subr.bf16.mxu0 0
    %740 = vmatpush1.bf16.msra.mxu0 %v589
    %741 = vmatprep.subr.bf16.mxu0 0
    %742 = vmatpush1.bf16.msra.mxu0 %v590
    %743 = vmatprep.subr.bf16.mxu0 0
    %744 = vmatpush1.bf16.msra.mxu0 %v591
    %745 = vmatprep.subr.bf16.mxu0 0
    %746 = vmatpush1.bf16.msra.mxu0 %v592
    %747 = vmatprep.subr.bf16.mxu0 0
    %748 = vmatpush1.bf16.msra.mxu0 %v593
    %749 = vmatprep.subr.bf16.mxu0 0
    %750 = vmatpush1.bf16.msra.mxu0 %v594
    %751 = vmatprep.subr.bf16.mxu0 0
    %752 = vmatpush1.bf16.msra.mxu0 %v595
    %753 = vmatprep.subr.bf16.mxu0 0
    %754 = vmatpush1.bf16.msra.mxu0 %v596
    %755 = vmatprep.subr.bf16.mxu0 0
    %756 = vmatpush1.bf16.msra.mxu0 %v597
    %757 = vmatprep.subr.bf16.mxu0 0
    %758 = vmatpush1.bf16.msra.mxu0 %v598
    %759 = vmatprep.subr.bf16.mxu0 0
    %760 = vmatpush1.bf16.msra.mxu0 %v599
    %761 = vmatprep.subr.bf16.mxu0 0
    %762 = vmatpush1.bf16.msra.mxu0 %v600
    %763 = vmatprep.subr.bf16.mxu0 0
    %764 = vmatpush1.bf16.msra.mxu0 %v601
    %765 = vmatprep.subr.bf16.mxu0 0
    %766 = vmatpush1.bf16.msra.mxu0 %v602
    %767 = vmatprep.subr.bf16.mxu0 0
    %768 = vmatpush1.bf16.msra.mxu0 %v603
    %769 = vmatprep.subr.bf16.mxu0 0
    %770 = vmatpush1.bf16.msra.mxu0 %v604
    %771 = vmatprep.mubr.bf16.mxu0 %v260
    %772 = vmatmul.mubr.bf16.gmra.mrb[0].mxu0 %v259
    %v773 = vpop.f32.mrb[0].mxu0
    %v774 = vadd.f32 %v734, %v773
    %v775 = vpop.f32.mrb[0].mxu0
    %v776 = vpop.f32.mrb[0].mxu0
    %v777 = vpop.f32.mrb[0].mxu0
    %778 = vdwg.mxu0
    %779 = vmatprep.subr.bf16.mxu0 0
    %780 = vmatpush1.bf16.msra.mxu0 %v605
    %781 = vmatprep.subr.bf16.mxu0 0
    %782 = vmatpush1.bf16.msra.mxu0 0
    %783 = vmatprep.subr.bf16.mxu0 0
    %784 = vmatpush1.bf16.msra.mxu0 0
    %785 = vmatprep.subr.bf16.mxu0 0
    %786 = vmatpush1.bf16.msra.mxu0 0
    %787 = vmatprep.subr.bf16.mxu0 0
    %788 = vmatpush1.bf16.msra.mxu0 0
    %789 = vmatprep.subr.bf16.mxu0 0
    %790 = vmatpush1.bf16.msra.mxu0 0
    %791 = vmatprep.subr.bf16.mxu0 0
    %792 = vmatpush1.bf16.msra.mxu0 0
    %793 = vmatprep.subr.bf16.mxu0 0
    %794 = vmatpush1.bf16.msra.mxu0 0
    %795 = vmatprep.subr.bf16.mxu0 0
    %796 = vmatpush1.bf16.msra.mxu0 0
    %797 = vmatprep.subr.bf16.mxu0 0
    %798 = vmatpush1.bf16.msra.mxu0 0
    %799 = vmatprep.subr.bf16.mxu0 0
    %800 = vmatpush1.bf16.msra.mxu0 0
    %801 = vmatprep.subr.bf16.mxu0 0
    %802 = vmatpush1.bf16.msra.mxu0 0
    %803 = vmatprep.subr.bf16.mxu0 0
    %804 = vmatpush1.bf16.msra.mxu0 0
    %805 = vmatprep.subr.bf16.mxu0 0
    %806 = vmatpush1.bf16.msra.mxu0 0
    %807 = vmatprep.subr.bf16.mxu0 0
    %808 = vmatpush1.bf16.msra.mxu0 0
    %809 = vmatprep.subr.bf16.mxu0 0
    %810 = vmatpush1.bf16.msra.mxu0 0
    %811 = vmatprep.mubr.bf16.mxu0 0
    %812 = vmatmul.mubr.bf16.gmra.mrb[0].mxu0 %v657
    %v813 = vpop.f32.mrb[0].mxu0
    %v814 = vadd.f32 %v774, %v813
    %v815 = vpop.f32.mrb[0].mxu0
    %v816 = vpop.f32.mrb[0].mxu0
    %v817 = vpop.f32.mrb[0].mxu0
    %818 = vdwg.mxu0
    %v917 = vunpack.c.l.b16 %v109
    %v918 = vunpack.c.l.b16 %v110
    %v919 = vunpack.c.l.b16 %v111
    %v920 = vunpack.c.l.b16 %v112
    %v921 = vunpack.c.l.b16 %v113
    %v922 = vunpack.c.l.b16 %v114
    %v923 = vunpack.c.l.b16 %v115
    %v924 = vunpack.c.l.b16 %v116
    %v925 = vunpack.c.l.b16 %v117
    %v926 = vunpack.c.l.b16 %v118
    %v927 = vunpack.c.l.b16 %v119
    %v928 = vunpack.c.l.b16 %v120
    %v929 = vunpack.c.l.b16 %v121
    %v930 = vunpack.c.l.b16 %v122
    %v931 = vunpack.c.l.b16 %v123
    %v932 = vunpack.c.l.b16 %v124
    %v933 = vunpack.c.l.b16 %v125
    %v934 = vunpack.c.l.b16 %v126
    %v935 = vunpack.c.l.b16 %v127
    %v936 = vunpack.c.l.b16 %v128
    %v937 = vunpack.c.l.b16 %v129
    %v938 = vunpack.c.l.b16 %v130
    %v939 = vunpack.c.l.b16 %v131
    %v940 = vunpack.c.l.b16 %v132
    %v941 = vunpack.c.l.b16 %v133
    %v942 = vunpack.c.l.b16 %v134
    %v943 = vunpack.c.l.b16 %v135
    %v944 = vunpack.c.l.b16 %v136
    %v945 = vunpack.c.l.b16 %v137
    %v946 = vunpack.c.l.b16 %v138
    %v947 = vunpack.c.l.b16 %v139
    %v948 = vunpack.c.l.b16 %v140
    %v949 = vunpack.c.l.b16 %v141
    %v950 = vunpack.c.l.b16 %v142
    %v951 = vunpack.c.l.b16 %v143
    %v952 = vunpack.c.l.b16 %v144
    %v953 = vunpack.c.l.b16 %v145
    %v954 = vunpack.c.l.b16 %v146
    %v955 = vunpack.c.l.b16 %v147
    %v956 = vunpack.c.l.b16 %v148
    %v957 = vunpack.c.l.b16 %v149
    %v958 = vunpack.c.l.b16 %v150
    %v959 = vunpack.c.l.b16 %v151
    %v960 = vunpack.c.l.b16 %v152
    %v961 = vunpack.c.l.b16 %v153
    %v962 = vunpack.c.l.b16 %v154
    %v963 = vunpack.c.l.b16 %v155
    %v964 = vunpack.c.l.b16 %v156
    %v965 = vunpack.c.l.b16 %v157
    %v966 = vunpack.c.l.b16 %v158
    %v967 = vunpack.c.l.b16 %v159
    %v968 = vunpack.c.l.b16 %v160
    %v969 = vunpack.c.l.b16 %v161
    %v970 = vunpack.c.l.b16 %v162
    %v971 = vunpack.c.l.b16 %v163
    %v972 = vunpack.c.l.b16 %v164
    %v973 = vunpack.c.l.b16 %v165
    %v974 = vunpack.c.l.b16 %v166
    %v975 = vunpack.c.l.b16 %v167
    %v976 = vunpack.c.l.b16 %v168
    %v977 = vunpack.c.l.b16 %v169
    %v978 = vunpack.c.l.b16 %v170
    %v979 = vunpack.c.l.b16 %v171
    %v980 = vunpack.c.l.b16 %v172
    %v981 = vunpack.c.l.b16 %v173
    %v982 = vunpack.c.l.b16 %v174
    %v983 = vunpack.c.l.b16 %v175
    %v984 = vunpack.c.l.b16 %v176
    %v985 = vunpack.c.l.b16 %v177
    %v986 = vunpack.c.l.b16 %v178
    %v987 = vunpack.c.l.b16 %v179
    %v988 = vunpack.c.l.b16 %v180
    %v989 = vunpack.c.l.b16 %v181
    %v990 = vunpack.c.l.b16 %v182
    %v991 = vunpack.c.l.b16 %v183
    %v992 = vunpack.c.l.b16 %v184
    %v993 = vunpack.c.l.b16 %v185
    %v994 = vunpack.c.l.b16 %v186
    %v995 = vunpack.c.l.b16 %v187
    %v996 = vunpack.c.l.b16 %v188
    %v997 = vunpack.c.l.b16 %v189
    %v998 = vunpack.c.l.b16 %v190
    %v999 = vunpack.c.l.b16 %v191
    %v1000 = vunpack.c.l.b16 %v192
    %v1001 = vunpack.c.l.b16 %v193
    %v1002 = vunpack.c.l.b16 %v194
    %v1003 = vunpack.c.l.b16 %v195
    %v1004 = vunpack.c.l.b16 %v196
    %v1005 = vunpack.c.l.b16 %v197
    %v1006 = vunpack.c.l.b16 %v198
    %v1007 = vunpack.c.l.b16 %v199
    %v1008 = vunpack.c.l.b16 %v200
    %v1009 = vunpack.c.l.b16 %v201
    %v1010 = vunpack.c.l.b16 %v202
    %v1011 = vunpack.c.l.b16 %v203
    %v1012 = vunpack.c.l.b16 %v204
    %v1013 = vunpack.c.l.b16 %v205
    %v1014 = vunpack.c.l.b16 %v206
    %v1015 = vpack.c.b16 %v918, %v917
    %v1016 = vpack.c.b16 %v920, %v919
    %v1017 = vpack.c.b16 %v922, %v921
    %v1018 = vpack.c.b16 %v924, %v923
    %v1019 = vpack.c.b16 %v926, %v925
    %v1020 = vpack.c.b16 %v928, %v927
    %v1021 = vpack.c.b16 %v930, %v929
    %v1022 = vpack.c.b16 %v932, %v931
    %v1023 = vpack.c.b16 %v934, %v933
    %v1024 = vpack.c.b16 %v936, %v935
    %v1025 = vpack.c.b16 %v938, %v937
    %v1026 = vpack.c.b16 %v940, %v939
    %v1027 = vpack.c.b16 %v942, %v941
    %v1028 = vpack.c.b16 %v944, %v943
    %v1029 = vpack.c.b16 %v946, %v945
    %v1030 = vpack.c.b16 %v948, %v947
    %v1031 = vpack.c.b16 %v950, %v949
    %v1032 = vpack.c.b16 %v952, %v951
    %v1033 = vpack.c.b16 %v954, %v953
    %v1034 = vpack.c.b16 %v956, %v955
    %v1035 = vpack.c.b16 %v958, %v957
    %v1036 = vpack.c.b16 %v960, %v959
    %v1037 = vpack.c.b16 %v962, %v961
    %v1038 = vpack.c.b16 %v964, %v963
    %v1039 = vpack.c.b16 %v966, %v965
    %v1040 = vpack.c.b16 %v968, %v967
    %v1041 = vpack.c.b16 %v970, %v969
    %v1042 = vpack.c.b16 %v972, %v971
    %v1043 = vpack.c.b16 %v974, %v973
    %v1044 = vpack.c.b16 %v976, %v975
    %v1045 = vpack.c.b16 %v978, %v977
    %v1046 = vpack.c.b16 %v980, %v979
    %v1047 = vpack.c.b16 %v982, %v981
    %v1048 = vpack.c.b16 %v984, %v983
    %v1049 = vpack.c.b16 %v986, %v985
    %v1050 = vpack.c.b16 %v988, %v987
    %v1051 = vpack.c.b16 %v990, %v989
    %v1052 = vpack.c.b16 %v992, %v991
    %v1053 = vpack.c.b16 %v994, %v993
    %v1054 = vpack.c.b16 %v996, %v995
    %v1055 = vpack.c.b16 %v998, %v997
    %v1056 = vpack.c.b16 %v1000, %v999
    %v1057 = vpack.c.b16 %v1002, %v1001
    %v1058 = vpack.c.b16 %v1004, %v1003
    %v1059 = vpack.c.b16 %v1006, %v1005
    %v1060 = vpack.c.b16 %v1008, %v1007
    %v1061 = vpack.c.b16 %v1010, %v1009
    %v1062 = vpack.c.b16 %v1012, %v1011
    %v1063 = vpack.c.b16 %v1014, %v1013
    %v1114 = vsel %vm655, %v108, 0
    %1116 = vmatprep.subr.bf16.mxu0 0
    %1117 = vmatpush1.bf16.msra.mxu0 %v1015
    %1118 = vmatprep.subr.bf16.mxu0 0
    %1119 = vmatpush1.bf16.msra.mxu0 %v1016
    %1120 = vmatprep.subr.bf16.mxu0 0
    %1121 = vmatpush1.bf16.msra.mxu0 %v1017
    %1122 = vmatprep.subr.bf16.mxu0 0
    %1123 = vmatpush1.bf16.msra.mxu0 %v1018
    %1124 = vmatprep.subr.bf16.mxu0 0
    %1125 = vmatpush1.bf16.msra.mxu0 %v1019
    %1126 = vmatprep.subr.bf16.mxu0 0
    %1127 = vmatpush1.bf16.msra.mxu0 %v1020
    %1128 = vmatprep.subr.bf16.mxu0 0
    %1129 = vmatpush1.bf16.msra.mxu0 %v1021
    %1130 = vmatprep.subr.bf16.mxu0 0
    %1131 = vmatpush1.bf16.msra.mxu0 %v1022
    %1132 = vmatprep.subr.bf16.mxu0 0
    %1133 = vmatpush1.bf16.msra.mxu0 %v1023
    %1134 = vmatprep.subr.bf16.mxu0 0
    %1135 = vmatpush1.bf16.msra.mxu0 %v1024
    %1136 = vmatprep.subr.bf16.mxu0 0
    %1137 = vmatpush1.bf16.msra.mxu0 %v1025
    %1138 = vmatprep.subr.bf16.mxu0 0
    %1139 = vmatpush1.bf16.msra.mxu0 %v1026
    %1140 = vmatprep.subr.bf16.mxu0 0
    %1141 = vmatpush1.bf16.msra.mxu0 %v1027
    %1142 = vmatprep.subr.bf16.mxu0 0
    %1143 = vmatpush1.bf16.msra.mxu0 %v1028
    %1144 = vmatprep.subr.bf16.mxu0 0
    %1145 = vmatpush1.bf16.msra.mxu0 %v1029
    %1146 = vmatprep.subr.bf16.mxu0 0
    %1147 = vmatpush1.bf16.msra.mxu0 %v1030
    %1148 = vmatprep.mubr.bf16.mxu0 %v103
    %1149 = vmatmul.mubr.bf16.gmra.mrb[0].mxu0 %v102
    %v1150 = vpop.f32.mrb[0].mxu0
    %v1151 = vadd.f32 %v814, %v1150
    %v1152 = vpop.f32.mrb[0].mxu0
    %v1153 = vpop.f32.mrb[0].mxu0
    %v1154 = vpop.f32.mrb[0].mxu0
    %1155 = vdwg.mxu0
    %1156 = vmatprep.subr.bf16.mxu0 0
    %1157 = vmatpush1.bf16.msra.mxu0 %v1031
    %1158 = vmatprep.subr.bf16.mxu0 0
    %1159 = vmatpush1.bf16.msra.mxu0 %v1032
    %1160 = vmatprep.subr.bf16.mxu0 0
    %1161 = vmatpush1.bf16.msra.mxu0 %v1033
    %1162 = vmatprep.subr.bf16.mxu0 0
    %1163 = vmatpush1.bf16.msra.mxu0 %v1034
    %1164 = vmatprep.subr.bf16.mxu0 0
    %1165 = vmatpush1.bf16.msra.mxu0 %v1035
    %1166 = vmatprep.subr.bf16.mxu0 0
    %1167 = vmatpush1.bf16.msra.mxu0 %v1036
    %1168 = vmatprep.subr.bf16.mxu0 0
    %1169 = vmatpush1.bf16.msra.mxu0 %v1037
    %1170 = vmatprep.subr.bf16.mxu0 0
    %1171 = vmatpush1.bf16.msra.mxu0 %v1038
    %1172 = vmatprep.subr.bf16.mxu0 0
    %1173 = vmatpush1.bf16.msra.mxu0 %v1039
    %1174 = vmatprep.subr.bf16.mxu0 0
    %1175 = vmatpush1.bf16.msra.mxu0 %v1040
    %1176 = vmatprep.subr.bf16.mxu0 0
    %1177 = vmatpush1.bf16.msra.mxu0 %v1041
    %1178 = vmatprep.subr.bf16.mxu0 0
    %1179 = vmatpush1.bf16.msra.mxu0 %v1042
    %1180 = vmatprep.subr.bf16.mxu0 0
    %1181 = vmatpush1.bf16.msra.mxu0 %v1043
    %1182 = vmatprep.subr.bf16.mxu0 0
    %1183 = vmatpush1.bf16.msra.mxu0 %v1044
    %1184 = vmatprep.subr.bf16.mxu0 0
    %1185 = vmatpush1.bf16.msra.mxu0 %v1045
    %1186 = vmatprep.subr.bf16.mxu0 0
    %1187 = vmatpush1.bf16.msra.mxu0 %v1046
    %1188 = vmatprep.mubr.bf16.mxu0 %v105
    %1189 = vmatmul.mubr.bf16.gmra.mrb[0].mxu0 %v104
    %v1190 = vpop.f32.mrb[0].mxu0
    %v1191 = vadd.f32 %v1151, %v1190
    %v1192 = vpop.f32.mrb[0].mxu0
    %v1193 = vpop.f32.mrb[0].mxu0
    %v1194 = vpop.f32.mrb[0].mxu0
    %1195 = vdwg.mxu0
    %1196 = vmatprep.subr.bf16.mxu0 0
    %1197 = vmatpush1.bf16.msra.mxu0 %v1047
    %1198 = vmatprep.subr.bf16.mxu0 0
    %1199 = vmatpush1.bf16.msra.mxu0 %v1048
    %1200 = vmatprep.subr.bf16.mxu0 0
    %1201 = vmatpush1.bf16.msra.mxu0 %v1049
    %1202 = vmatprep.subr.bf16.mxu0 0
    %1203 = vmatpush1.bf16.msra.mxu0 %v1050
    %1204 = vmatprep.subr.bf16.mxu0 0
    %1205 = vmatpush1.bf16.msra.mxu0 %v1051
    %1206 = vmatprep.subr.bf16.mxu0 0
    %1207 = vmatpush1.bf16.msra.mxu0 %v1052
    %1208 = vmatprep.subr.bf16.mxu0 0
    %1209 = vmatpush1.bf16.msra.mxu0 %v1053
    %1210 = vmatprep.subr.bf16.mxu0 0
    %1211 = vmatpush1.bf16.msra.mxu0 %v1054
    %1212 = vmatprep.subr.bf16.mxu0 0
    %1213 = vmatpush1.bf16.msra.mxu0 %v1055
    %1214 = vmatprep.subr.bf16.mxu0 0
    %1215 = vmatpush1.bf16.msra.mxu0 %v1056
    %1216 = vmatprep.subr.bf16.mxu0 0
    %1217 = vmatpush1.bf16.msra.mxu0 %v1057
    %1218 = vmatprep.subr.bf16.mxu0 0
    %1219 = vmatpush1.bf16.msra.mxu0 %v1058
    %1220 = vmatprep.subr.bf16.mxu0 0
    %1221 = vmatpush1.bf16.msra.mxu0 %v1059
    %1222 = vmatprep.subr.bf16.mxu0 0
    %1223 = vmatpush1.bf16.msra.mxu0 %v1060
    %1224 = vmatprep.subr.bf16.mxu0 0
    %1225 = vmatpush1.bf16.msra.mxu0 %v1061
    %1226 = vmatprep.subr.bf16.mxu0 0
    %1227 = vmatpush1.bf16.msra.mxu0 %v1062
    %1228 = vmatprep.mubr.bf16.mxu0 %v107
    %1229 = vmatmul.mubr.bf16.gmra.mrb[0].mxu0 %v106
    %v1230 = vpop.f32.mrb[0].mxu0
    %v1231 = vadd.f32 %v1191, %v1230
    %v1232 = vpop.f32.mrb[0].mxu0
    %v1233 = vpop.f32.mrb[0].mxu0
    %v1234 = vpop.f32.mrb[0].mxu0
    %1235 = vdwg.mxu0
    %1236 = vmatprep.subr.bf16.mxu0 0
    %1237 = vmatpush1.bf16.msra.mxu0 %v1063
    %1238 = vmatprep.subr.bf16.mxu0 0
    %1239 = vmatpush1.bf16.msra.mxu0 0
    %1240 = vmatprep.subr.bf16.mxu0 0
    %1241 = vmatpush1.bf16.msra.mxu0 0
    %1242 = vmatprep.subr.bf16.mxu0 0
    %1243 = vmatpush1.bf16.msra.mxu0 0
    %1244 = vmatprep.subr.bf16.mxu0 0
    %1245 = vmatpush1.bf16.msra.mxu0 0
    %1246 = vmatprep.subr.bf16.mxu0 0
    %1247 = vmatpush1.bf16.msra.mxu0 0
    %1248 = vmatprep.subr.bf16.mxu0 0
    %1249 = vmatpush1.bf16.msra.mxu0 0
    %1250 = vmatprep.subr.bf16.mxu0 0
    %1251 = vmatpush1.bf16.msra.mxu0 0
    %1252 = vmatprep.subr.bf16.mxu0 0
    %1253 = vmatpush1.bf16.msra.mxu0 0
    %1254 = vmatprep.subr.bf16.mxu0 0
    %1255 = vmatpush1.bf16.msra.mxu0 0
    %1256 = vmatprep.subr.bf16.mxu0 0
    %1257 = vmatpush1.bf16.msra.mxu0 0
    %1258 = vmatprep.subr.bf16.mxu0 0
    %1259 = vmatpush1.bf16.msra.mxu0 0
    %1260 = vmatprep.subr.bf16.mxu0 0
    %1261 = vmatpush1.bf16.msra.mxu0 0
    %1262 = vmatprep.subr.bf16.mxu0 0
    %1263 = vmatpush1.bf16.msra.mxu0 0
    %1264 = vmatprep.subr.bf16.mxu0 0
    %1265 = vmatpush1.bf16.msra.mxu0 0
    %1266 = vmatprep.subr.bf16.mxu0 0
    %1267 = vmatpush1.bf16.msra.mxu0 0
    %1268 = vmatprep.mubr.bf16.mxu0 0
    %1269 = vmatmul.mubr.bf16.gmra.mrb[0].mxu0 %v1114
    %v1270 = vpop.f32.mrb[0].mxu0
    %v1271 = vadd.f32 %v1231, %v1270
    %v1272 = vpop.f32.mrb[0].mxu0
    %v1273 = vpop.f32.mrb[0].mxu0
    %v1274 = vpop.f32.mrb[0].mxu0
    %1275 = vdwg.mxu0
    %s1276 = sld [smem:[#allocation2 + $0x3]]
    %v1277 = vmul.f32 %v58, %v211
    %v1278 = vmul.f32 %v59, %v212
    %v1279 = vstv %s1276
    %v1280 = vmul.f32 %v1279, %v58
    %v1281 = vmul.f32 %v1279, %v59
    %v1282 = vsub.f32 %v1277, %v1280
    %v1283 = vsub.f32 %v1278, %v1281
    %v1286 = vcombine.high %v1282, %v1282
    %v1288 = vunpack.c.l.s4 1983009808
    %v1289 = vunpack.c.0.s8 %v1288
    %v1290 = vlaneseq
    %v1291 = vshrl.u32 %v1290, 7
    %v1292 = vsub.s32 %v1289, %v1291
    %v1293 = vrot.slane %v1282, %v1292
    %v1295 = vunpack.c.l.s4 1983009808
    %v1296 = vunpack.c.0.s8 %v1295
    %v1297 = vlaneseq
    %v1298 = vshrl.u32 %v1297, 7
    %v1299 = vsub.s32 %v1296, %v1298
    %v1300 = vrot.slane %v1286, %v1299
    %v1301 = vcombine.high %v1293, %v1293
    %v1302 = vcombine.high %v1300, %v1300
    %v1303 = vcombine.high %v1283, %v1283
    %v1305 = vunpack.c.l.s4 1983009808
    %v1306 = vunpack.c.0.s8 %v1305
    %v1307 = vlaneseq
    %v1308 = vshrl.u32 %v1307, 7
    %v1309 = vsub.s32 %v1306, %v1308
    %v1310 = vrot.slane %v1283, %v1309
    %v1312 = vunpack.c.l.s4 1983009808
    %v1313 = vunpack.c.0.s8 %v1312
    %v1314 = vlaneseq
    %v1315 = vshrl.u32 %v1314, 7
    %v1316 = vsub.s32 %v1313, %v1315
    %v1317 = vrot.slane %v1303, %v1316
    %v1318 = vcombine.high %v1310, %v1310
    %v1326 = vpack.c.bf16 %v1293, %v1293
    %v1327 = vpack.c.bf16 %v1301, %v1301
    %v1328 = vpack.c.bf16 %v1300, %v1300
    %v1329 = vpack.c.bf16 %v1302, %v1302
    %v1330 = vpack.c.bf16 %v1310, %v1310
    %v1331 = vpack.c.bf16 %v1318, %v1318
    %v1332 = vpack.c.bf16 %v1317, %v1317
    %s1333 = scalar_lea.vmem %s2, 784
    %v1334 = vld [vmem:[%s1333] sm:$0xf]
    %v1335 = vld [vmem:[%s1333 + $0x4] sm:$0xf]
    %v1336 = vld [vmem:[%s1333 + $0x8] sm:$0xf]
    %v1337 = vld [vmem:[%s1333 + $0xc] sm:$0xf]
    %v1338 = vld [vmem:[%s1333 + $0x10] sm:$0xf]
    %v1339 = vld [vmem:[%s1333 + $0x14] sm:$0xf]
    %v1340 = vld [vmem:[%s1333 + $0x18] sm:$0xf]
    %v1341 = vld [vmem:[%s1333 + $0x1c] sm:$0xf]
    %v1342 = vld [vmem:[%s1333 + $0x20] sm:$0xf]
    %v1343 = vld [vmem:[%s1333 + $0x24] sm:$0xf]
    %v1344 = vld [vmem:[%s1333 + $0x28] sm:$0xf]
    %v1345 = vld [vmem:[%s1333 + $0x2c] sm:$0xf]
    %v1346 = vld [vmem:[%s1333 + $0x30] sm:$0xf]
    %v1347 = vld [vmem:[%s1333 + $0x34] sm:$0xf]
    %v1348 = vld [vmem:[%s1333 + $0x38] sm:$0xf]
    %v1349 = vld [vmem:[%s1333 + $0x3c] sm:$0xf]
    %v1350 = vld [vmem:[%s1333 + $0x40] sm:$0xf]
    %v1351 = vld [vmem:[%s1333 + $0x44] sm:$0xf]
    %v1352 = vld [vmem:[%s1333 + $0x48] sm:$0xf]
    %v1353 = vld [vmem:[%s1333 + $0x4c] sm:$0xf]
    %v1354 = vld [vmem:[%s1333 + $0x50] sm:$0xf]
    %v1355 = vld [vmem:[%s1333 + $0x54] sm:$0xf]
    %v1356 = vld [vmem:[%s1333 + $0x58] sm:$0xf]
    %v1357 = vld [vmem:[%s1333 + $0x5c] sm:$0xf]
    %v1358 = vld [vmem:[%s1333 + $0x60] sm:$0xf]
    %v1359 = vld [vmem:[%s1333 + $0x64] sm:$0xf]
    %v1360 = vld [vmem:[%s1333 + $0x68] sm:$0xf]
    %v1361 = vld [vmem:[%s1333 + $0x6c] sm:$0xf]
    %v1362 = vld [vmem:[%s1333 + $0x70] sm:$0xf]
    %v1363 = vld [vmem:[%s1333 + $0x74] sm:$0xf]
    %v1364 = vld [vmem:[%s1333 + $0x78] sm:$0xf]
    %v1365 = vld [vmem:[%s1333 + $0x7c] sm:$0xf]
    %v1366 = vld [vmem:[%s1333 + $0x80] sm:$0xf]
    %v1367 = vld [vmem:[%s1333 + $0x84] sm:$0xf]
    %v1368 = vld [vmem:[%s1333 + $0x88] sm:$0xf]
    %v1369 = vld [vmem:[%s1333 + $0x8c] sm:$0xf]
    %v1370 = vld [vmem:[%s1333 + $0x90] sm:$0xf]
    %v1371 = vld [vmem:[%s1333 + $0x94] sm:$0xf]
    %v1372 = vld [vmem:[%s1333 + $0x98] sm:$0xf]
    %v1373 = vld [vmem:[%s1333 + $0x9c] sm:$0xf]
    %v1374 = vld [vmem:[%s1333 + $0xa0] sm:$0xf]
    %v1375 = vld [vmem:[%s1333 + $0xa4] sm:$0xf]
    %v1376 = vld [vmem:[%s1333 + $0xa8] sm:$0xf]
    %v1377 = vld [vmem:[%s1333 + $0xac] sm:$0xf]
    %v1378 = vld [vmem:[%s1333 + $0xb0] sm:$0xf]
    %v1379 = vld [vmem:[%s1333 + $0xb4] sm:$0xf]
    %v1380 = vld [vmem:[%s1333 + $0xb8] sm:$0xf]
    %v1381 = vld [vmem:[%s1333 + $0xbc] sm:$0xf]
    %v1382 = vld [vmem:[%s1333 + $0xc0] sm:$0xf]
    %v1383 = vld [vmem:[%s1333 + $0xc4] sm:$0xf]
    %v1384 = vld [vmem:[%s1333 + $0xc8] sm:$0xf]
    %v1385 = vld [vmem:[%s1333 + $0xcc] sm:$0xf]
    %v1386 = vld [vmem:[%s1333 + $0xd0] sm:$0xf]
    %v1387 = vld [vmem:[%s1333 + $0xd4] sm:$0xf]
    %v1388 = vld [vmem:[%s1333 + $0xd8] sm:$0xf]
    %v1389 = vld [vmem:[%s1333 + $0xdc] sm:$0xf]
    %v1390 = vld [vmem:[%s1333 + $0xe0] sm:$0xf]
    %v1391 = vld [vmem:[%s1333 + $0xe4] sm:$0xf]
    %v1392 = vld [vmem:[%s1333 + $0xe8] sm:$0xf]
    %v1393 = vld [vmem:[%s1333 + $0xec] sm:$0xf]
    %v1394 = vld [vmem:[%s1333 + $0xf0] sm:$0xf]
    %v1395 = vld [vmem:[%s1333 + $0xf4] sm:$0xf]
    %v1396 = vld [vmem:[%s1333 + $0xf8] sm:$0xf]
    %v1397 = vld [vmem:[%s1333 + $0xfc] sm:$0xf]
    %v1398 = vld [vmem:[%s1333 + $0x100] sm:$0xf]
    %v1399 = vld [vmem:[%s1333 + $0x104] sm:$0xf]
    %v1400 = vld [vmem:[%s1333 + $0x108] sm:$0xf]
    %v1401 = vld [vmem:[%s1333 + $0x10c] sm:$0xf]
    %v1402 = vld [vmem:[%s1333 + $0x110] sm:$0xf]
    %v1403 = vld [vmem:[%s1333 + $0x114] sm:$0xf]
    %v1404 = vld [vmem:[%s1333 + $0x118] sm:$0xf]
    %v1405 = vld [vmem:[%s1333 + $0x11c] sm:$0xf]
    %v1406 = vld [vmem:[%s1333 + $0x120] sm:$0xf]
    %v1407 = vld [vmem:[%s1333 + $0x124] sm:$0xf]
    %v1408 = vld [vmem:[%s1333 + $0x128] sm:$0xf]
    %v1409 = vld [vmem:[%s1333 + $0x12c] sm:$0xf]
    %v1410 = vld [vmem:[%s1333 + $0x130] sm:$0xf]
    %v1411 = vld [vmem:[%s1333 + $0x134] sm:$0xf]
    %v1412 = vld [vmem:[%s1333 + $0x138] sm:$0xf]
    %v1413 = vld [vmem:[%s1333 + $0x13c] sm:$0xf]
    %v1414 = vld [vmem:[%s1333 + $0x140] sm:$0xf]
    %v1415 = vld [vmem:[%s1333 + $0x144] sm:$0xf]
    %v1416 = vld [vmem:[%s1333 + $0x148] sm:$0xf]
    %v1417 = vld [vmem:[%s1333 + $0x14c] sm:$0xf]
    %v1418 = vld [vmem:[%s1333 + $0x150] sm:$0xf]
    %v1419 = vld [vmem:[%s1333 + $0x154] sm:$0xf]
    %v1420 = vld [vmem:[%s1333 + $0x158] sm:$0xf]
    %v1421 = vld [vmem:[%s1333 + $0x15c] sm:$0xf]
    %v1422 = vld [vmem:[%s1333 + $0x160] sm:$0xf]
    %v1423 = vld [vmem:[%s1333 + $0x164] sm:$0xf]
    %v1424 = vld [vmem:[%s1333 + $0x168] sm:$0xf]
    %v1425 = vld [vmem:[%s1333 + $0x16c] sm:$0xf]
    %v1426 = vld [vmem:[%s1333 + $0x170] sm:$0xf]
    %v1427 = vld [vmem:[%s1333 + $0x174] sm:$0xf]
    %v1428 = vld [vmem:[%s1333 + $0x178] sm:$0xf]
    %v1429 = vld [vmem:[%s1333 + $0x17c] sm:$0xf]
    %v1430 = vld [vmem:[%s1333 + $0x180] sm:$0xf]
    %v1431 = vld [vmem:[%s1333 + $0x184] sm:$0xf]
    %v1530 = vunpack.c.l.b16 %v1334
    %v1531 = vunpack.c.l.b16 %v1335
    %v1532 = vunpack.c.l.b16 %v1336
    %v1533 = vunpack.c.l.b16 %v1337
    %v1534 = vunpack.c.l.b16 %v1338
    %v1535 = vunpack.c.l.b16 %v1339
    %v1536 = vunpack.c.l.b16 %v1340
    %v1537 = vunpack.c.l.b16 %v1341
    %v1538 = vunpack.c.l.b16 %v1342
    %v1539 = vunpack.c.l.b16 %v1343
    %v1540 = vunpack.c.l.b16 %v1344
    %v1541 = vunpack.c.l.b16 %v1345
    %v1542 = vunpack.c.l.b16 %v1346
    %v1543 = vunpack.c.l.b16 %v1347
    %v1544 = vunpack.c.l.b16 %v1348
    %v1545 = vunpack.c.l.b16 %v1349
    %v1546 = vunpack.c.l.b16 %v1350
    %v1547 = vunpack.c.l.b16 %v1351
    %v1548 = vunpack.c.l.b16 %v1352
    %v1549 = vunpack.c.l.b16 %v1353
    %v1550 = vunpack.c.l.b16 %v1354
    %v1551 = vunpack.c.l.b16 %v1355
    %v1552 = vunpack.c.l.b16 %v1356
    %v1553 = vunpack.c.l.b16 %v1357
    %v1554 = vunpack.c.l.b16 %v1358
    %v1555 = vunpack.c.l.b16 %v1359
    %v1556 = vunpack.c.l.b16 %v1360
    %v1557 = vunpack.c.l.b16 %v1361
    %v1558 = vunpack.c.l.b16 %v1362
    %v1559 = vunpack.c.l.b16 %v1363
    %v1560 = vunpack.c.l.b16 %v1364
    %v1561 = vunpack.c.l.b16 %v1365
    %v1562 = vunpack.c.l.b16 %v1366
    %v1563 = vunpack.c.l.b16 %v1367
    %v1564 = vunpack.c.l.b16 %v1368
    %v1565 = vunpack.c.l.b16 %v1369
    %v1566 = vunpack.c.l.b16 %v1370
    %v1567 = vunpack.c.l.b16 %v1371
    %v1568 = vunpack.c.l.b16 %v1372
    %v1569 = vunpack.c.l.b16 %v1373
    %v1570 = vunpack.c.l.b16 %v1374
    %v1571 = vunpack.c.l.b16 %v1375
    %v1572 = vunpack.c.l.b16 %v1376
    %v1573 = vunpack.c.l.b16 %v1377
    %v1574 = vunpack.c.l.b16 %v1378
    %v1575 = vunpack.c.l.b16 %v1379
    %v1576 = vunpack.c.l.b16 %v1380
    %v1577 = vunpack.c.l.b16 %v1381
    %v1578 = vunpack.c.l.b16 %v1382
    %v1579 = vunpack.c.l.b16 %v1383
    %v1580 = vunpack.c.l.b16 %v1384
    %v1581 = vunpack.c.l.b16 %v1385
    %v1582 = vunpack.c.l.b16 %v1386
    %v1583 = vunpack.c.l.b16 %v1387
    %v1584 = vunpack.c.l.b16 %v1388
    %v1585 = vunpack.c.l.b16 %v1389
    %v1586 = vunpack.c.l.b16 %v1390
    %v1587 = vunpack.c.l.b16 %v1391
    %v1588 = vunpack.c.l.b16 %v1392
    %v1589 = vunpack.c.l.b16 %v1393
    %v1590 = vunpack.c.l.b16 %v1394
    %v1591 = vunpack.c.l.b16 %v1395
    %v1592 = vunpack.c.l.b16 %v1396
    %v1593 = vunpack.c.l.b16 %v1397
    %v1594 = vunpack.c.l.b16 %v1398
    %v1595 = vunpack.c.l.b16 %v1399
    %v1596 = vunpack.c.l.b16 %v1400
    %v1597 = vunpack.c.l.b16 %v1401
    %v1598 = vunpack.c.l.b16 %v1402
    %v1599 = vunpack.c.l.b16 %v1403
    %v1600 = vunpack.c.l.b16 %v1404
    %v1601 = vunpack.c.l.b16 %v1405
    %v1602 = vunpack.c.l.b16 %v1406
    %v1603 = vunpack.c.l.b16 %v1407
    %v1604 = vunpack.c.l.b16 %v1408
    %v1605 = vunpack.c.l.b16 %v1409
    %v1606 = vunpack.c.l.b16 %v1410
    %v1607 = vunpack.c.l.b16 %v1411
    %v1608 = vunpack.c.l.b16 %v1412
    %v1609 = vunpack.c.l.b16 %v1413
    %v1610 = vunpack.c.l.b16 %v1414
    %v1611 = vunpack.c.l.b16 %v1415
    %v1612 = vunpack.c.l.b16 %v1416
    %v1613 = vunpack.c.l.b16 %v1417
    %v1614 = vunpack.c.l.b16 %v1418
    %v1615 = vunpack.c.l.b16 %v1419
    %v1616 = vunpack.c.l.b16 %v1420
    %v1617 = vunpack.c.l.b16 %v1421
    %v1618 = vunpack.c.l.b16 %v1422
    %v1619 = vunpack.c.l.b16 %v1423
    %v1620 = vunpack.c.l.b16 %v1424
    %v1621 = vunpack.c.l.b16 %v1425
    %v1622 = vunpack.c.l.b16 %v1426
    %v1623 = vunpack.c.l.b16 %v1427
    %v1624 = vunpack.c.l.b16 %v1428
    %v1625 = vunpack.c.l.b16 %v1429
    %v1626 = vunpack.c.l.b16 %v1430
    %v1627 = vunpack.c.l.b16 %v1431
    %v1628 = vpack.c.b16 %v1531, %v1530
    %v1629 = vpack.c.b16 %v1533, %v1532
    %v1630 = vpack.c.b16 %v1535, %v1534
    %v1631 = vpack.c.b16 %v1537, %v1536
    %v1632 = vpack.c.b16 %v1539, %v1538
    %v1633 = vpack.c.b16 %v1541, %v1540
    %v1634 = vpack.c.b16 %v1543, %v1542
    %v1635 = vpack.c.b16 %v1545, %v1544
    %v1636 = vpack.c.b16 %v1547, %v1546
    %v1637 = vpack.c.b16 %v1549, %v1548
    %v1638 = vpack.c.b16 %v1551, %v1550
    %v1639 = vpack.c.b16 %v1553, %v1552
    %v1640 = vpack.c.b16 %v1555, %v1554
    %v1641 = vpack.c.b16 %v1557, %v1556
    %v1642 = vpack.c.b16 %v1559, %v1558
    %v1643 = vpack.c.b16 %v1561, %v1560
    %v1644 = vpack.c.b16 %v1563, %v1562
    %v1645 = vpack.c.b16 %v1565, %v1564
    %v1646 = vpack.c.b16 %v1567, %v1566
    %v1647 = vpack.c.b16 %v1569, %v1568
    %v1648 = vpack.c.b16 %v1571, %v1570
    %v1649 = vpack.c.b16 %v1573, %v1572
    %v1650 = vpack.c.b16 %v1575, %v1574
    %v1651 = vpack.c.b16 %v1577, %v1576
    %v1652 = vpack.c.b16 %v1579, %v1578
    %v1653 = vpack.c.b16 %v1581, %v1580
    %v1654 = vpack.c.b16 %v1583, %v1582
    %v1655 = vpack.c.b16 %v1585, %v1584
    %v1656 = vpack.c.b16 %v1587, %v1586
    %v1657 = vpack.c.b16 %v1589, %v1588
    %v1658 = vpack.c.b16 %v1591, %v1590
    %v1659 = vpack.c.b16 %v1593, %v1592
    %v1660 = vpack.c.b16 %v1595, %v1594
    %v1661 = vpack.c.b16 %v1597, %v1596
    %v1662 = vpack.c.b16 %v1599, %v1598
    %v1663 = vpack.c.b16 %v1601, %v1600
    %v1664 = vpack.c.b16 %v1603, %v1602
    %v1665 = vpack.c.b16 %v1605, %v1604
    %v1666 = vpack.c.b16 %v1607, %v1606
    %v1667 = vpack.c.b16 %v1609, %v1608
    %v1668 = vpack.c.b16 %v1611, %v1610
    %v1669 = vpack.c.b16 %v1613, %v1612
    %v1670 = vpack.c.b16 %v1615, %v1614
    %v1671 = vpack.c.b16 %v1617, %v1616
    %v1672 = vpack.c.b16 %v1619, %v1618
    %v1673 = vpack.c.b16 %v1621, %v1620
    %v1674 = vpack.c.b16 %v1623, %v1622
    %v1675 = vpack.c.b16 %v1625, %v1624
    %v1676 = vpack.c.b16 %v1627, %v1626
    %v1727 = vsel %vm655, %v1332, 0
    %1729 = vmatprep.subr.bf16.mxu0 0
    %1730 = vmatpush1.bf16.msra.mxu0 %v1628
    %1731 = vmatprep.subr.bf16.mxu0 0
    %1732 = vmatpush1.bf16.msra.mxu0 %v1629
    %1733 = vmatprep.subr.bf16.mxu0 0
    %1734 = vmatpush1.bf16.msra.mxu0 %v1630
    %1735 = vmatprep.subr.bf16.mxu0 0
    %1736 = vmatpush1.bf16.msra.mxu0 %v1631
    %1737 = vmatprep.subr.bf16.mxu0 0
    %1738 = vmatpush1.bf16.msra.mxu0 %v1632
    %1739 = vmatprep.subr.bf16.mxu0 0
    %1740 = vmatpush1.bf16.msra.mxu0 %v1633
    %1741 = vmatprep.subr.bf16.mxu0 0
    %1742 = vmatpush1.bf16.msra.mxu0 %v1634
    %1743 = vmatprep.subr.bf16.mxu0 0
    %1744 = vmatpush1.bf16.msra.mxu0 %v1635
    %1745 = vmatprep.subr.bf16.mxu0 0
    %1746 = vmatpush1.bf16.msra.mxu0 %v1636
    %1747 = vmatprep.subr.bf16.mxu0 0
    %1748 = vmatpush1.bf16.msra.mxu0 %v1637
    %1749 = vmatprep.subr.bf16.mxu0 0
    %1750 = vmatpush1.bf16.msra.mxu0 %v1638
    %1751 = vmatprep.subr.bf16.mxu0 0
    %1752 = vmatpush1.bf16.msra.mxu0 %v1639
    %1753 = vmatprep.subr.bf16.mxu0 0
    %1754 = vmatpush1.bf16.msra.mxu0 %v1640
    %1755 = vmatprep.subr.bf16.mxu0 0
    %1756 = vmatpush1.bf16.msra.mxu0 %v1641
    %1757 = vmatprep.subr.bf16.mxu0 0
    %1758 = vmatpush1.bf16.msra.mxu0 %v1642
    %1759 = vmatprep.subr.bf16.mxu0 0
    %1760 = vmatpush1.bf16.msra.mxu0 %v1643
    %1761 = vmatprep.mubr.bf16.mxu0 %v1327
    %1762 = vmatmul.mubr.bf16.gmra.mrb[0].mxu0 %v1326
    %v1763 = vpop.f32.mrb[0].mxu0
    %v1764 = vadd.f32 0.0, %v1763
    %v1765 = vpop.f32.mrb[0].mxu0
    %v1766 = vpop.f32.mrb[0].mxu0
    %v1767 = vpop.f32.mrb[0].mxu0
    %1768 = vdwg.mxu0
    %1769 = vmatprep.subr.bf16.mxu0 0
    %1770 = vmatpush1.bf16.msra.mxu0 %v1644
    %1771 = vmatprep.subr.bf16.mxu0 0
    %1772 = vmatpush1.bf16.msra.mxu0 %v1645
    %1773 = vmatprep.subr.bf16.mxu0 0
    %1774 = vmatpush1.bf16.msra.mxu0 %v1646
    %1775 = vmatprep.subr.bf16.mxu0 0
    %1776 = vmatpush1.bf16.msra.mxu0 %v1647
    %1777 = vmatprep.subr.bf16.mxu0 0
    %1778 = vmatpush1.bf16.msra.mxu0 %v1648
    %1779 = vmatprep.subr.bf16.mxu0 0
    %1780 = vmatpush1.bf16.msra.mxu0 %v1649
    %1781 = vmatprep.subr.bf16.mxu0 0
    %1782 = vmatpush1.bf16.msra.mxu0 %v1650
    %1783 = vmatprep.subr.bf16.mxu0 0
    %1784 = vmatpush1.bf16.msra.mxu0 %v1651
    %1785 = vmatprep.subr.bf16.mxu0 0
    %1786 = vmatpush1.bf16.msra.mxu0 %v1652
    %1787 = vmatprep.subr.bf16.mxu0 0
    %1788 = vmatpush1.bf16.msra.mxu0 %v1653
    %1789 = vmatprep.subr.bf16.mxu0 0
    %1790 = vmatpush1.bf16.msra.mxu0 %v1654
    %1791 = vmatprep.subr.bf16.mxu0 0
    %1792 = vmatpush1.bf16.msra.mxu0 %v1655
    %1793 = vmatprep.subr.bf16.mxu0 0
    %1794 = vmatpush1.bf16.msra.mxu0 %v1656
    %1795 = vmatprep.subr.bf16.mxu0 0
    %1796 = vmatpush1.bf16.msra.mxu0 %v1657
    %1797 = vmatprep.subr.bf16.mxu0 0
    %1798 = vmatpush1.bf16.msra.mxu0 %v1658
    %1799 = vmatprep.subr.bf16.mxu0 0
    %1800 = vmatpush1.bf16.msra.mxu0 %v1659
    %1801 = vmatprep.mubr.bf16.mxu0 %v1329
    %1802 = vmatmul.mubr.bf16.gmra.mrb[0].mxu0 %v1328
    %v1803 = vpop.f32.mrb[0].mxu0
    %v1804 = vadd.f32 %v1764, %v1803
    %v1805 = vpop.f32.mrb[0].mxu0
    %v1806 = vpop.f32.mrb[0].mxu0
    %v1807 = vpop.f32.mrb[0].mxu0
    %1808 = vdwg.mxu0
    %1809 = vmatprep.subr.bf16.mxu0 0
    %1810 = vmatpush1.bf16.msra.mxu0 %v1660
    %1811 = vmatprep.subr.bf16.mxu0 0
    %1812 = vmatpush1.bf16.msra.mxu0 %v1661
    %1813 = vmatprep.subr.bf16.mxu0 0
    %1814 = vmatpush1.bf16.msra.mxu0 %v1662
    %1815 = vmatprep.subr.bf16.mxu0 0
    %1816 = vmatpush1.bf16.msra.mxu0 %v1663
    %1817 = vmatprep.subr.bf16.mxu0 0
    %1818 = vmatpush1.bf16.msra.mxu0 %v1664
    %1819 = vmatprep.subr.bf16.mxu0 0
    %1820 = vmatpush1.bf16.msra.mxu0 %v1665
    %1821 = vmatprep.subr.bf16.mxu0 0
    %1822 = vmatpush1.bf16.msra.mxu0 %v1666
    %1823 = vmatprep.subr.bf16.mxu0 0
    %1824 = vmatpush1.bf16.msra.mxu0 %v1667
    %1825 = vmatprep.subr.bf16.mxu0 0
    %1826 = vmatpush1.bf16.msra.mxu0 %v1668
    %1827 = vmatprep.subr.bf16.mxu0 0
    %1828 = vmatpush1.bf16.msra.mxu0 %v1669
    %1829 = vmatprep.subr.bf16.mxu0 0
    %1830 = vmatpush1.bf16.msra.mxu0 %v1670
    %1831 = vmatprep.subr.bf16.mxu0 0
    %1832 = vmatpush1.bf16.msra.mxu0 %v1671
    %1833 = vmatprep.subr.bf16.mxu0 0
    %1834 = vmatpush1.bf16.msra.mxu0 %v1672
    %1835 = vmatprep.subr.bf16.mxu0 0
    %1836 = vmatpush1.bf16.msra.mxu0 %v1673
    %1837 = vmatprep.subr.bf16.mxu0 0
    %1838 = vmatpush1.bf16.msra.mxu0 %v1674
    %1839 = vmatprep.subr.bf16.mxu0 0
    %1840 = vmatpush1.bf16.msra.mxu0 %v1675
    %1841 = vmatprep.mubr.bf16.mxu0 %v1331
    %1842 = vmatmul.mubr.bf16.gmra.mrb[0].mxu0 %v1330
    %v1843 = vpop.f32.mrb[0].mxu0
    %v1844 = vadd.f32 %v1804, %v1843
    %v1845 = vpop.f32.mrb[0].mxu0
    %v1846 = vpop.f32.mrb[0].mxu0
    %v1847 = vpop.f32.mrb[0].mxu0
    %1848 = vdwg.mxu0
    %1849 = vmatprep.subr.bf16.mxu0 0
    %1850 = vmatpush1.bf16.msra.mxu0 %v1676
    %1851 = vmatprep.subr.bf16.mxu0 0
    %1852 = vmatpush1.bf16.msra.mxu0 0
    %1853 = vmatprep.subr.bf16.mxu0 0
    %1854 = vmatpush1.bf16.msra.mxu0 0
    %1855 = vmatprep.subr.bf16.mxu0 0
    %1856 = vmatpush1.bf16.msra.mxu0 0
    %1857 = vmatprep.subr.bf16.mxu0 0
    %1858 = vmatpush1.bf16.msra.mxu0 0
    %1859 = vmatprep.subr.bf16.mxu0 0
    %1860 = vmatpush1.bf16.msra.mxu0 0
    %1861 = vmatprep.subr.bf16.mxu0 0
    %1862 = vmatpush1.bf16.msra.mxu0 0
    %1863 = vmatprep.subr.bf16.mxu0 0
    %1864 = vmatpush1.bf16.msra.mxu0 0
    %1865 = vmatprep.subr.bf16.mxu0 0
    %1866 = vmatpush1.bf16.msra.mxu0 0
    %1867 = vmatprep.subr.bf16.mxu0 0
    %1868 = vmatpush1.bf16.msra.mxu0 0
    %1869 = vmatprep.subr.bf16.mxu0 0
    %1870 = vmatpush1.bf16.msra.mxu0 0
    %1871 = vmatprep.subr.bf16.mxu0 0
    %1872 = vmatpush1.bf16.msra.mxu0 0
    %1873 = vmatprep.subr.bf16.mxu0 0
    %1874 = vmatpush1.bf16.msra.mxu0 0
    %1875 = vmatprep.subr.bf16.mxu0 0
    %1876 = vmatpush1.bf16.msra.mxu0 0
    %1877 = vmatprep.subr.bf16.mxu0 0
    %1878 = vmatpush1.bf16.msra.mxu0 0
    %1879 = vmatprep.subr.bf16.mxu0 0
    %1880 = vmatpush1.bf16.msra.mxu0 0
    %1881 = vmatprep.mubr.bf16.mxu0 0
    %1882 = vmatmul.mubr.bf16.gmra.mrb[0].mxu0 %v1727
    %v1883 = vpop.f32.mrb[0].mxu0
    %v1884 = vadd.f32 %v1844, %v1883
    %v1885 = vpop.f32.mrb[0].mxu0
    %v1886 = vpop.f32.mrb[0].mxu0
    %v1887 = vpop.f32.mrb[0].mxu0
    %1888 = vdwg.mxu0
    %v1889 = vadd.f32 %v1271, %v1884
    %s1890 = sld [smem:[#allocation2 + $0x4]]
    %v1891 = vmul.f32 %v58, %v1282
    %v1892 = vmul.f32 %v59, %v1283
    %v1893 = vstv %s1890
    %v1894 = vmul.f32 %v1893, %v211
    %v1895 = vmul.f32 %v1893, %v212
    %v1896 = vsub.f32 %v1891, %v1894
    %v1897 = vsub.f32 %v1892, %v1895
    %v1900 = vcombine.high %v1896, %v1896
    %v1902 = vunpack.c.l.s4 1983009808
    %v1903 = vunpack.c.0.s8 %v1902
    %v1904 = vlaneseq
    %v1905 = vshrl.u32 %v1904, 7
    %v1906 = vsub.s32 %v1903, %v1905
    %v1907 = vrot.slane %v1896, %v1906
    %v1909 = vunpack.c.l.s4 1983009808
    %v1910 = vunpack.c.0.s8 %v1909
    %v1911 = vlaneseq
    %v1912 = vshrl.u32 %v1911, 7
    %v1913 = vsub.s32 %v1910, %v1912
    %v1914 = vrot.slane %v1900, %v1913
    %v1915 = vcombine.high %v1907, %v1907
    %v1916 = vcombine.high %v1914, %v1914
    %v1917 = vcombine.high %v1897, %v1897
    %v1919 = vunpack.c.l.s4 1983009808
    %v1920 = vunpack.c.0.s8 %v1919
    %v1921 = vlaneseq
    %v1922 = vshrl.u32 %v1921, 7
    %v1923 = vsub.s32 %v1920, %v1922
    %v1924 = vrot.slane %v1897, %v1923
    %v1926 = vunpack.c.l.s4 1983009808
    %v1927 = vunpack.c.0.s8 %v1926
    %v1928 = vlaneseq
    %v1929 = vshrl.u32 %v1928, 7
    %v1930 = vsub.s32 %v1927, %v1929
    %v1931 = vrot.slane %v1917, %v1930
    %v1932 = vcombine.high %v1924, %v1924
    %v1940 = vpack.c.bf16 %v1907, %v1907
    %v1941 = vpack.c.bf16 %v1915, %v1915
    %v1942 = vpack.c.bf16 %v1914, %v1914
    %v1943 = vpack.c.bf16 %v1916, %v1916
    %v1944 = vpack.c.bf16 %v1924, %v1924
    %v1945 = vpack.c.bf16 %v1932, %v1932
    %v1946 = vpack.c.bf16 %v1931, %v1931
    %s1947 = scalar_lea.vmem %s2, 1176
    %v1948 = vld [vmem:[%s1947] sm:$0xf]
    %v1949 = vld [vmem:[%s1947 + $0x4] sm:$0xf]
    %v1950 = vld [vmem:[%s1947 + $0x8] sm:$0xf]
    %v1951 = vld [vmem:[%s1947 + $0xc] sm:$0xf]
    %v1952 = vld [vmem:[%s1947 + $0x10] sm:$0xf]
    %v1953 = vld [vmem:[%s1947 + $0x14] sm:$0xf]
    %v1954 = vld [vmem:[%s1947 + $0x18] sm:$0xf]
    %v1955 = vld [vmem:[%s1947 + $0x1c] sm:$0xf]
    %v1956 = vld [vmem:[%s1947 + $0x20] sm:$0xf]
    %v1957 = vld [vmem:[%s1947 + $0x24] sm:$0xf]
    %v1958 = vld [vmem:[%s1947 + $0x28] sm:$0xf]
    %v1959 = vld [vmem:[%s1947 + $0x2c] sm:$0xf]
    %v1960 = vld [vmem:[%s1947 + $0x30] sm:$0xf]
    %v1961 = vld [vmem:[%s1947 + $0x34] sm:$0xf]
    %v1962 = vld [vmem:[%s1947 + $0x38] sm:$0xf]
    %v1963 = vld [vmem:[%s1947 + $0x3c] sm:$0xf]
    %v1964 = vld [vmem:[%s1947 + $0x40] sm:$0xf]
    %v1965 = vld [vmem:[%s1947 + $0x44] sm:$0xf]
    %v1966 = vld [vmem:[%s1947 + $0x48] sm:$0xf]
    %v1967 = vld [vmem:[%s1947 + $0x4c] sm:$0xf]
    %v1968 = vld [vmem:[%s1947 + $0x50] sm:$0xf]
    %v1969 = vld [vmem:[%s1947 + $0x54] sm:$0xf]
    %v1970 = vld [vmem:[%s1947 + $0x58] sm:$0xf]
    %v1971 = vld [vmem:[%s1947 + $0x5c] sm:$0xf]
    %v1972 = vld [vmem:[%s1947 + $0x60] sm:$0xf]
    %v1973 = vld [vmem:[%s1947 + $0x64] sm:$0xf]
    %v1974 = vld [vmem:[%s1947 + $0x68] sm:$0xf]
    %v1975 = vld [vmem:[%s1947 + $0x6c] sm:$0xf]
    %v1976 = vld [vmem:[%s1947 + $0x70] sm:$0xf]
    %v1977 = vld [vmem:[%s1947 + $0x74] sm:$0xf]
    %v1978 = vld [vmem:[%s1947 + $0x78] sm:$0xf]
    %v1979 = vld [vmem:[%s1947 + $0x7c] sm:$0xf]
    %v1980 = vld [vmem:[%s1947 + $0x80] sm:$0xf]
    %v1981 = vld [vmem:[%s1947 + $0x84] sm:$0xf]
    %v1982 = vld [vmem:[%s1947 + $0x88] sm:$0xf]
    %v1983 = vld [vmem:[%s1947 + $0x8c] sm:$0xf]
    %v1984 = vld [vmem:[%s1947 + $0x90] sm:$0xf]
    %v1985 = vld [vmem:[%s1947 + $0x94] sm:$0xf]
    %v1986 = vld [vmem:[%s1947 + $0x98] sm:$0xf]
    %v1987 = vld [vmem:[%s1947 + $0x9c] sm:$0xf]
    %v1988 = vld [vmem:[%s1947 + $0xa0] sm:$0xf]
    %v1989 = vld [vmem:[%s1947 + $0xa4] sm:$0xf]
    %v1990 = vld [vmem:[%s1947 + $0xa8] sm:$0xf]
    %v1991 = vld [vmem:[%s1947 + $0xac] sm:$0xf]
    %v1992 = vld [vmem:[%s1947 + $0xb0] sm:$0xf]
    %v1993 = vld [vmem:[%s1947 + $0xb4] sm:$0xf]
    %v1994 = vld [vmem:[%s1947 + $0xb8] sm:$0xf]
    %v1995 = vld [vmem:[%s1947 + $0xbc] sm:$0xf]
    %v1996 = vld [vmem:[%s1947 + $0xc0] sm:$0xf]
    %v1997 = vld [vmem:[%s1947 + $0xc4] sm:$0xf]
    %v1998 = vld [vmem:[%s1947 + $0xc8] sm:$0xf]
    %v1999 = vld [vmem:[%s1947 + $0xcc] sm:$0xf]
    %v2000 = vld [vmem:[%s1947 + $0xd0] sm:$0xf]
    %v2001 = vld [vmem:[%s1947 + $0xd4] sm:$0xf]
    %v2002 = vld [vmem:[%s1947 + $0xd8] sm:$0xf]
    %v2003 = vld [vmem:[%s1947 + $0xdc] sm:$0xf]
    %v2004 = vld [vmem:[%s1947 + $0xe0] sm:$0xf]
    %v2005 = vld [vmem:[%s1947 + $0xe4] sm:$0xf]
    %v2006 = vld [vmem:[%s1947 + $0xe8] sm:$0xf]
    %v2007 = vld [vmem:[%s1947 + $0xec] sm:$0xf]
    %v2008 = vld [vmem:[%s1947 + $0xf0] sm:$0xf]
    %v2009 = vld [vmem:[%s1947 + $0xf4] sm:$0xf]
    %v2010 = vld [vmem:[%s1947 + $0xf8] sm:$0xf]
    %v2011 = vld [vmem:[%s1947 + $0xfc] sm:$0xf]
    %v2012 = vld [vmem:[%s1947 + $0x100] sm:$0xf]
    %v2013 = vld [vmem:[%s1947 + $0x104] sm:$0xf]
    %v2014 = vld [vmem:[%s1947 + $0x108] sm:$0xf]
    %v2015 = vld [vmem:[%s1947 + $0x10c] sm:$0xf]
    %v2016 = vld [vmem:[%s1947 + $0x110] sm:$0xf]
    %v2017 = vld [vmem:[%s1947 + $0x114] sm:$0xf]
    %v2018 = vld [vmem:[%s1947 + $0x118] sm:$0xf]
    %v2019 = vld [vmem:[%s1947 + $0x11c] sm:$0xf]
    %v2020 = vld [vmem:[%s1947 + $0x120] sm:$0xf]
    %v2021 = vld [vmem:[%s1947 + $0x124] sm:$0xf]
    %v2022 = vld [vmem:[%s1947 + $0x128] sm:$0xf]
    %v2023 = vld [vmem:[%s1947 + $0x12c] sm:$0xf]
    %v2024 = vld [vmem:[%s1947 + $0x130] sm:$0xf]
    %v2025 = vld [vmem:[%s1947 + $0x134] sm:$0xf]
    %v2026 = vld [vmem:[%s1947 + $0x138] sm:$0xf]
    %v2027 = vld [vmem:[%s1947 + $0x13c] sm:$0xf]
    %v2028 = vld [vmem:[%s1947 + $0x140] sm:$0xf]
    %v2029 = vld [vmem:[%s1947 + $0x144] sm:$0xf]
    %v2030 = vld [vmem:[%s1947 + $0x148] sm:$0xf]
    %v2031 = vld [vmem:[%s1947 + $0x14c] sm:$0xf]
    %v2032 = vld [vmem:[%s1947 + $0x150] sm:$0xf]
    %v2033 = vld [vmem:[%s1947 + $0x154] sm:$0xf]
    %v2034 = vld [vmem:[%s1947 + $0x158] sm:$0xf]
    %v2035 = vld [vmem:[%s1947 + $0x15c] sm:$0xf]
    %v2036 = vld [vmem:[%s1947 + $0x160] sm:$0xf]
    %v2037 = vld [vmem:[%s1947 + $0x164] sm:$0xf]
    %v2038 = vld [vmem:[%s1947 + $0x168] sm:$0xf]
    %v2039 = vld [vmem:[%s1947 + $0x16c] sm:$0xf]
    %v2040 = vld [vmem:[%s1947 + $0x170] sm:$0xf]
    %v2041 = vld [vmem:[%s1947 + $0x174] sm:$0xf]
    %v2042 = vld [vmem:[%s1947 + $0x178] sm:$0xf]
    %v2043 = vld [vmem:[%s1947 + $0x17c] sm:$0xf]
    %v2044 = vld [vmem:[%s1947 + $0x180] sm:$0xf]
    %v2045 = vld [vmem:[%s1947 + $0x184] sm:$0xf]
    %v2144 = vunpack.c.l.b16 %v1948
    %v2145 = vunpack.c.l.b16 %v1949
    %v2146 = vunpack.c.l.b16 %v1950
    %v2147 = vunpack.c.l.b16 %v1951
    %v2148 = vunpack.c.l.b16 %v1952
    %v2149 = vunpack.c.l.b16 %v1953
    %v2150 = vunpack.c.l.b16 %v1954
    %v2151 = vunpack.c.l.b16 %v1955
    %v2152 = vunpack.c.l.b16 %v1956
    %v2153 = vunpack.c.l.b16 %v1957
    %v2154 = vunpack.c.l.b16 %v1958
    %v2155 = vunpack.c.l.b16 %v1959
    %v2156 = vunpack.c.l.b16 %v1960
    %v2157 = vunpack.c.l.b16 %v1961
    %v2158 = vunpack.c.l.b16 %v1962
    %v2159 = vunpack.c.l.b16 %v1963
    %v2160 = vunpack.c.l.b16 %v1964
    %v2161 = vunpack.c.l.b16 %v1965
    %v2162 = vunpack.c.l.b16 %v1966
    %v2163 = vunpack.c.l.b16 %v1967
    %v2164 = vunpack.c.l.b16 %v1968
    %v2165 = vunpack.c.l.b16 %v1969
    %v2166 = vunpack.c.l.b16 %v1970
    %v2167 = vunpack.c.l.b16 %v1971
    %v2168 = vunpack.c.l.b16 %v1972
    %v2169 = vunpack.c.l.b16 %v1973
    %v2170 = vunpack.c.l.b16 %v1974
    %v2171 = vunpack.c.l.b16 %v1975
    %v2172 = vunpack.c.l.b16 %v1976
    %v2173 = vunpack.c.l.b16 %v1977
    %v2174 = vunpack.c.l.b16 %v1978
    %v2175 = vunpack.c.l.b16 %v1979
    %v2176 = vunpack.c.l.b16 %v1980
    %v2177 = vunpack.c.l.b16 %v1981
    %v2178 = vunpack.c.l.b16 %v1982
    %v2179 = vunpack.c.l.b16 %v1983
    %v2180 = vunpack.c.l.b16 %v1984
    %v2181 = vunpack.c.l.b16 %v1985
    %v2182 = vunpack.c.l.b16 %v1986
    %v2183 = vunpack.c.l.b16 %v1987
    %v2184 = vunpack.c.l.b16 %v1988
    %v2185 = vunpack.c.l.b16 %v1989
    %v2186 = vunpack.c.l.b16 %v1990
    %v2187 = vunpack.c.l.b16 %v1991
    %v2188 = vunpack.c.l.b16 %v1992
    %v2189 = vunpack.c.l.b16 %v1993
    %v2190 = vunpack.c.l.b16 %v1994
    %v2191 = vunpack.c.l.b16 %v1995
    %v2192 = vunpack.c.l.b16 %v1996
    %v2193 = vunpack.c.l.b16 %v1997
    %v2194 = vunpack.c.l.b16 %v1998
    %v2195 = vunpack.c.l.b16 %v1999
    %v2196 = vunpack.c.l.b16 %v2000
    %v2197 = vunpack.c.l.b16 %v2001
    %v2198 = vunpack.c.l.b16 %v2002
    %v2199 = vunpack.c.l.b16 %v2003
    %v2200 = vunpack.c.l.b16 %v2004
    %v2201 = vunpack.c.l.b16 %v2005
    %v2202 = vunpack.c.l.b16 %v2006
    %v2203 = vunpack.c.l.b16 %v2007
    %v2204 = vunpack.c.l.b16 %v2008
    %v2205 = vunpack.c.l.b16 %v2009
    %v2206 = vunpack.c.l.b16 %v2010
    %v2207 = vunpack.c.l.b16 %v2011
    %v2208 = vunpack.c.l.b16 %v2012
    %v2209 = vunpack.c.l.b16 %v2013
    %v2210 = vunpack.c.l.b16 %v2014
    %v2211 = vunpack.c.l.b16 %v2015
    %v2212 = vunpack.c.l.b16 %v2016
    %v2213 = vunpack.c.l.b16 %v2017
    %v2214 = vunpack.c.l.b16 %v2018
    %v2215 = vunpack.c.l.b16 %v2019
    %v2216 = vunpack.c.l.b16 %v2020
    %v2217 = vunpack.c.l.b16 %v2021
    %v2218 = vunpack.c.l.b16 %v2022
    %v2219 = vunpack.c.l.b16 %v2023
    %v2220 = vunpack.c.l.b16 %v2024
    %v2221 = vunpack.c.l.b16 %v2025
    %v2222 = vunpack.c.l.b16 %v2026
    %v2223 = vunpack.c.l.b16 %v2027
    %v2224 = vunpack.c.l.b16 %v2028
    %v2225 = vunpack.c.l.b16 %v2029
    %v2226 = vunpack.c.l.b16 %v2030
    %v2227 = vunpack.c.l.b16 %v2031
    %v2228 = vunpack.c.l.b16 %v2032
    %v2229 = vunpack.c.l.b16 %v2033
    %v2230 = vunpack.c.l.b16 %v2034
    %v2231 = vunpack.c.l.b16 %v2035
    %v2232 = vunpack.c.l.b16 %v2036
    %v2233 = vunpack.c.l.b16 %v2037
    %v2234 = vunpack.c.l.b16 %v2038
    %v2235 = vunpack.c.l.b16 %v2039
    %v2236 = vunpack.c.l.b16 %v2040
    %v2237 = vunpack.c.l.b16 %v2041
    %v2238 = vunpack.c.l.b16 %v2042
    %v2239 = vunpack.c.l.b16 %v2043
    %v2240 = vunpack.c.l.b16 %v2044
    %v2241 = vunpack.c.l.b16 %v2045
    %v2242 = vpack.c.b16 %v2145, %v2144
    %v2243 = vpack.c.b16 %v2147, %v2146
    %v2244 = vpack.c.b16 %v2149, %v2148
    %v2245 = vpack.c.b16 %v2151, %v2150
    %v2246 = vpack.c.b16 %v2153, %v2152
    %v2247 = vpack.c.b16 %v2155, %v2154
    %v2248 = vpack.c.b16 %v2157, %v2156
    %v2249 = vpack.c.b16 %v2159, %v2158
    %v2250 = vpack.c.b16 %v2161, %v2160
    %v2251 = vpack.c.b16 %v2163, %v2162
    %v2252 = vpack.c.b16 %v2165, %v2164
    %v2253 = vpack.c.b16 %v2167, %v2166
    %v2254 = vpack.c.b16 %v2169, %v2168
    %v2255 = vpack.c.b16 %v2171, %v2170
    %v2256 = vpack.c.b16 %v2173, %v2172
    %v2257 = vpack.c.b16 %v2175, %v2174
    %v2258 = vpack.c.b16 %v2177, %v2176
    %v2259 = vpack.c.b16 %v2179, %v2178
    %v2260 = vpack.c.b16 %v2181, %v2180
    %v2261 = vpack.c.b16 %v2183, %v2182
    %v2262 = vpack.c.b16 %v2185, %v2184
    %v2263 = vpack.c.b16 %v2187, %v2186
    %v2264 = vpack.c.b16 %v2189, %v2188
    %v2265 = vpack.c.b16 %v2191, %v2190
    %v2266 = vpack.c.b16 %v2193, %v2192
    %v2267 = vpack.c.b16 %v2195, %v2194
    %v2268 = vpack.c.b16 %v2197, %v2196
    %v2269 = vpack.c.b16 %v2199, %v2198
    %v2270 = vpack.c.b16 %v2201, %v2200
    %v2271 = vpack.c.b16 %v2203, %v2202
    %v2272 = vpack.c.b16 %v2205, %v2204
    %v2273 = vpack.c.b16 %v2207, %v2206
    %v2274 = vpack.c.b16 %v2209, %v2208
    %v2275 = vpack.c.b16 %v2211, %v2210
    %v2276 = vpack.c.b16 %v2213, %v2212
    %v2277 = vpack.c.b16 %v2215, %v2214
    %v2278 = vpack.c.b16 %v2217, %v2216
    %v2279 = vpack.c.b16 %v2219, %v2218
    %v2280 = vpack.c.b16 %v2221, %v2220
    %v2281 = vpack.c.b16 %v2223, %v2222
    %v2282 = vpack.c.b16 %v2225, %v2224
    %v2283 = vpack.c.b16 %v2227, %v2226
    %v2284 = vpack.c.b16 %v2229, %v2228
    %v2285 = vpack.c.b16 %v2231, %v2230
    %v2286 = vpack.c.b16 %v2233, %v2232
    %v2287 = vpack.c.b16 %v2235, %v2234
    %v2288 = vpack.c.b16 %v2237, %v2236
    %v2289 = vpack.c.b16 %v2239, %v2238
    %v2290 = vpack.c.b16 %v2241, %v2240
    %v2341 = vsel %vm655, %v1946, 0
    %2343 = vmatprep.subr.bf16.mxu0 0
    %2344 = vmatpush1.bf16.msra.mxu0 %v2242
    %2345 = vmatprep.subr.bf16.mxu0 0
    %2346 = vmatpush1.bf16.msra.mxu0 %v2243
    %2347 = vmatprep.subr.bf16.mxu0 0
    %2348 = vmatpush1.bf16.msra.mxu0 %v2244
    %2349 = vmatprep.subr.bf16.mxu0 0
    %2350 = vmatpush1.bf16.msra.mxu0 %v2245
    %2351 = vmatprep.subr.bf16.mxu0 0
    %2352 = vmatpush1.bf16.msra.mxu0 %v2246
    %2353 = vmatprep.subr.bf16.mxu0 0
    %2354 = vmatpush1.bf16.msra.mxu0 %v2247
    %2355 = vmatprep.subr.bf16.mxu0 0
    %2356 = vmatpush1.bf16.msra.mxu0 %v2248
    %2357 = vmatprep.subr.bf16.mxu0 0
    %2358 = vmatpush1.bf16.msra.mxu0 %v2249
    %2359 = vmatprep.subr.bf16.mxu0 0
    %2360 = vmatpush1.bf16.msra.mxu0 %v2250
    %2361 = vmatprep.subr.bf16.mxu0 0
    %2362 = vmatpush1.bf16.msra.mxu0 %v2251
    %2363 = vmatprep.subr.bf16.mxu0 0
    %2364 = vmatpush1.bf16.msra.mxu0 %v2252
    %2365 = vmatprep.subr.bf16.mxu0 0
    %2366 = vmatpush1.bf16.msra.mxu0 %v2253
    %2367 = vmatprep.subr.bf16.mxu0 0
    %2368 = vmatpush1.bf16.msra.mxu0 %v2254
    %2369 = vmatprep.subr.bf16.mxu0 0
    %2370 = vmatpush1.bf16.msra.mxu0 %v2255
    %2371 = vmatprep.subr.bf16.mxu0 0
    %2372 = vmatpush1.bf16.msra.mxu0 %v2256
    %2373 = vmatprep.subr.bf16.mxu0 0
    %2374 = vmatpush1.bf16.msra.mxu0 %v2257
    %2375 = vmatprep.mubr.bf16.mxu0 %v1941
    %2376 = vmatmul.mubr.bf16.gmra.mrb[0].mxu0 %v1940
    %v2377 = vpop.f32.mrb[0].mxu0
    %v2378 = vadd.f32 0.0, %v2377
    %v2379 = vpop.f32.mrb[0].mxu0
    %v2380 = vpop.f32.mrb[0].mxu0
    %v2381 = vpop.f32.mrb[0].mxu0
    %2382 = vdwg.mxu0
    %2383 = vmatprep.subr.bf16.mxu0 0
    %2384 = vmatpush1.bf16.msra.mxu0 %v2258
    %2385 = vmatprep.subr.bf16.mxu0 0
    %2386 = vmatpush1.bf16.msra.mxu0 %v2259
    %2387 = vmatprep.subr.bf16.mxu0 0
    %2388 = vmatpush1.bf16.msra.mxu0 %v2260
    %2389 = vmatprep.subr.bf16.mxu0 0
    %2390 = vmatpush1.bf16.msra.mxu0 %v2261
    %2391 = vmatprep.subr.bf16.mxu0 0
    %2392 = vmatpush1.bf16.msra.mxu0 %v2262
    %2393 = vmatprep.subr.bf16.mxu0 0
    %2394 = vmatpush1.bf16.msra.mxu0 %v2263
    %2395 = vmatprep.subr.bf16.mxu0 0
    %2396 = vmatpush1.bf16.msra.mxu0 %v2264
    %2397 = vmatprep.subr.bf16.mxu0 0
    %2398 = vmatpush1.bf16.msra.mxu0 %v2265
    %2399 = vmatprep.subr.bf16.mxu0 0
    %2400 = vmatpush1.bf16.msra.mxu0 %v2266
    %2401 = vmatprep.subr.bf16.mxu0 0
    %2402 = vmatpush1.bf16.msra.mxu0 %v2267
    %2403 = vmatprep.subr.bf16.mxu0 0
    %2404 = vmatpush1.bf16.msra.mxu0 %v2268
    %2405 = vmatprep.subr.bf16.mxu0 0
    %2406 = vmatpush1.bf16.msra.mxu0 %v2269
    %2407 = vmatprep.subr.bf16.mxu0 0
    %2408 = vmatpush1.bf16.msra.mxu0 %v2270
    %2409 = vmatprep.subr.bf16.mxu0 0
    %2410 = vmatpush1.bf16.msra.mxu0 %v2271
    %2411 = vmatprep.subr.bf16.mxu0 0
    %2412 = vmatpush1.bf16.msra.mxu0 %v2272
    %2413 = vmatprep.subr.bf16.mxu0 0
    %2414 = vmatpush1.bf16.msra.mxu0 %v2273
    %2415 = vmatprep.mubr.bf16.mxu0 %v1943
    %2416 = vmatmul.mubr.bf16.gmra.mrb[0].mxu0 %v1942
    %v2417 = vpop.f32.mrb[0].mxu0
    %v2418 = vadd.f32 %v2378, %v2417
    %v2419 = vpop.f32.mrb[0].mxu0
    %v2420 = vpop.f32.mrb[0].mxu0
    %v2421 = vpop.f32.mrb[0].mxu0
    %2422 = vdwg.mxu0
    %2423 = vmatprep.subr.bf16.mxu0 0
    %2424 = vmatpush1.bf16.msra.mxu0 %v2274
    %2425 = vmatprep.subr.bf16.mxu0 0
    %2426 = vmatpush1.bf16.msra.mxu0 %v2275
    %2427 = vmatprep.subr.bf16.mxu0 0
    %2428 = vmatpush1.bf16.msra.mxu0 %v2276
    %2429 = vmatprep.subr.bf16.mxu0 0
    %2430 = vmatpush1.bf16.msra.mxu0 %v2277
    %2431 = vmatprep.subr.bf16.mxu0 0
    %2432 = vmatpush1.bf16.msra.mxu0 %v2278
    %2433 = vmatprep.subr.bf16.mxu0 0
    %2434 = vmatpush1.bf16.msra.mxu0 %v2279
    %2435 = vmatprep.subr.bf16.mxu0 0
    %2436 = vmatpush1.bf16.msra.mxu0 %v2280
    %2437 = vmatprep.subr.bf16.mxu0 0
    %2438 = vmatpush1.bf16.msra.mxu0 %v2281
    %2439 = vmatprep.subr.bf16.mxu0 0
    %2440 = vmatpush1.bf16.msra.mxu0 %v2282
    %2441 = vmatprep.subr.bf16.mxu0 0
    %2442 = vmatpush1.bf16.msra.mxu0 %v2283
    %2443 = vmatprep.subr.bf16.mxu0 0
    %2444 = vmatpush1.bf16.msra.mxu0 %v2284
    %2445 = vmatprep.subr.bf16.mxu0 0
    %2446 = vmatpush1.bf16.msra.mxu0 %v2285
    %2447 = vmatprep.subr.bf16.mxu0 0
    %2448 = vmatpush1.bf16.msra.mxu0 %v2286
    %2449 = vmatprep.subr.bf16.mxu0 0
    %2450 = vmatpush1.bf16.msra.mxu0 %v2287
    %2451 = vmatprep.subr.bf16.mxu0 0
    %2452 = vmatpush1.bf16.msra.mxu0 %v2288
    %2453 = vmatprep.subr.bf16.mxu0 0
    %2454 = vmatpush1.bf16.msra.mxu0 %v2289
    %2455 = vmatprep.mubr.bf16.mxu0 %v1945
    %2456 = vmatmul.mubr.bf16.gmra.mrb[0].mxu0 %v1944
    %v2457 = vpop.f32.mrb[0].mxu0
    %v2458 = vadd.f32 %v2418, %v2457
    %v2459 = vpop.f32.mrb[0].mxu0
    %v2460 = vpop.f32.mrb[0].mxu0
    %v2461 = vpop.f32.mrb[0].mxu0
    %2462 = vdwg.mxu0
    %2463 = vmatprep.subr.bf16.mxu0 0
    %2464 = vmatpush1.bf16.msra.mxu0 %v2290
    %2465 = vmatprep.subr.bf16.mxu0 0
    %2466 = vmatpush1.bf16.msra.mxu0 0
    %2467 = vmatprep.subr.bf16.mxu0 0
    %2468 = vmatpush1.bf16.msra.mxu0 0
    %2469 = vmatprep.subr.bf16.mxu0 0
    %2470 = vmatpush1.bf16.msra.mxu0 0
    %2471 = vmatprep.subr.bf16.mxu0 0
    %2472 = vmatpush1.bf16.msra.mxu0 0
    %2473 = vmatprep.subr.bf16.mxu0 0
    %2474 = vmatpush1.bf16.msra.mxu0 0
    %2475 = vmatprep.subr.bf16.mxu0 0
    %2476 = vmatpush1.bf16.msra.mxu0 0
    %2477 = vmatprep.subr.bf16.mxu0 0
    %2478 = vmatpush1.bf16.msra.mxu0 0
    %2479 = vmatprep.subr.bf16.mxu0 0
    %2480 = vmatpush1.bf16.msra.mxu0 0
    %2481 = vmatprep.subr.bf16.mxu0 0
    %2482 = vmatpush1.bf16.msra.mxu0 0
    %2483 = vmatprep.subr.bf16.mxu0 0
    %2484 = vmatpush1.bf16.msra.mxu0 0
    %2485 = vmatprep.subr.bf16.mxu0 0
    %2486 = vmatpush1.bf16.msra.mxu0 0
    %2487 = vmatprep.subr.bf16.mxu0 0
    %2488 = vmatpush1.bf16.msra.mxu0 0
    %2489 = vmatprep.subr.bf16.mxu0 0
    %2490 = vmatpush1.bf16.msra.mxu0 0
    %2491 = vmatprep.subr.bf16.mxu0 0
    %2492 = vmatpush1.bf16.msra.mxu0 0
    %2493 = vmatprep.subr.bf16.mxu0 0
    %2494 = vmatpush1.bf16.msra.mxu0 0
    %2495 = vmatprep.mubr.bf16.mxu0 0
    %2496 = vmatmul.mubr.bf16.gmra.mrb[0].mxu0 %v2341
    %v2497 = vpop.f32.mrb[0].mxu0
    %v2498 = vadd.f32 %v2458, %v2497
    %v2499 = vpop.f32.mrb[0].mxu0
    %v2500 = vpop.f32.mrb[0].mxu0
    %v2501 = vpop.f32.mrb[0].mxu0
    %2502 = vdwg.mxu0
    %v2503 = vadd.f32 %v1889, %v2498
    %v2504 = vld [vmem:[%s3] sm:$0x1]
    %v2506 = vlaneseq
    %v2507 = vshrl.u32 %v2506, 7
    %v2508 = vsub.s32 0, %v2507
    %v2509 = vrot.slane %v2504, %v2508
    %v2511 = vadd.f32 %v2503, %v2509
    %vm2512 = vcmask 254976
    %v2513 = vsel %vm2512, %v2511, 0.0
    %2514 = vadd.xlane.f32.xlu0 %v2513
    %v2515 = vpop.xlane.xlu0 %2514
    %v2516 = vrcp.pop 32.0
    %v2517 = vmul.f32 %v2515, %v2516
    %v2518 = vsub.f32 %v2511, %v2517
    %v2519 = vmul.f32 %v2518, %v2518
    %v2520 = vsel %vm2512, %v2519, 0.0
    %2521 = vadd.xlane.f32.xlu0 %v2520
    %v2522 = vpop.xlane.xlu0 %2521
    %v2523 = vmul.f32 %v2522, %v2516
    %v2524 = vadd.f32 %v2523, 1e-05
    %v2525 = vrsqrt.pop %v2524
    %v2526 = vmul.f32 %v2518, %v2525
    %v2527 = vld [vmem:[%s4] sm:$0x1]
    %v2529 = vlaneseq
    %v2530 = vshrl.u32 %v2529, 7
    %v2531 = vsub.s32 0, %v2530
    %v2532 = vrot.slane %v2527, %v2531
    %v2534 = vmul.f32 %v2526, %v2532
    %v2535 = vld [vmem:[%s5] sm:$0x1]
    %v2537 = vlaneseq
    %v2538 = vshrl.u32 %v2537, 7
    %v2539 = vsub.s32 0, %v2538
    %v2540 = vrot.slane %v2535, %v2539
    %v2542 = vadd.f32 %v2534, %v2540
    %v2543 = vtanh.pop %v2542
    %v2544 = vpack.c.bf16 %v2543, %v2543
    %v2545 = vld [vmem:[%s6] sm:$0xf]
    %v2546 = vld [vmem:[%s6 + $0x4] sm:$0xf]
    %v2547 = vld [vmem:[%s6 + $0x8] sm:$0xf]
    %v2548 = vld [vmem:[%s6 + $0xc] sm:$0xf]
    %s2549 = sld [smem:[#allocation2 + $0x82]]
    %v2550 = vmul.f32 %v2543, %v2543
    %v2551 = vstv %s2549
    %v2552 = vsub.f32 %v2550, %v2551
    %v2553 = vpack.c.bf16 %v2552, %v2552
    %s2554 = scalar_lea.vmem %s6, 16
    %v2555 = vld [vmem:[%s2554] sm:$0xf]
    %v2556 = vld [vmem:[%s2554 + $0x4] sm:$0xf]
    %v2557 = vld [vmem:[%s2554 + $0x8] sm:$0xf]
    %v2558 = vld [vmem:[%s2554 + $0xc] sm:$0xf]
    %v2563 = vunpack.c.l.b16 %v2555
    %v2564 = vunpack.c.l.b16 %v2556
    %v2565 = vunpack.c.l.b16 %v2557
    %v2566 = vunpack.c.l.b16 %v2558
    %v2567 = vpack.c.b16 %v2564, %v2563
    %v2568 = vpack.c.b16 %v2566, %v2565
    %vm2571 = vcmask 261120
    %v2573 = vsel %vm2571, %v2553, 0
    %2575 = vmatprep.subr.bf16.mxu0 0
    %2576 = vmatpush1.bf16.msra.mxu0 %v2567
    %2577 = vmatprep.subr.bf16.mxu0 0
    %2578 = vmatpush1.bf16.msra.mxu0 %v2568
    %2579 = vmatprep.subr.bf16.mxu0 0
    %2580 = vmatpush1.bf16.msra.mxu0 0
    %2581 = vmatprep.subr.bf16.mxu0 0
    %2582 = vmatpush1.bf16.msra.mxu0 0
    %2583 = vmatprep.subr.bf16.mxu0 0
    %2584 = vmatpush1.bf16.msra.mxu0 0
    %2585 = vmatprep.subr.bf16.mxu0 0
    %2586 = vmatpush1.bf16.msra.mxu0 0
    %2587 = vmatprep.subr.bf16.mxu0 0
    %2588 = vmatpush1.bf16.msra.mxu0 0
    %2589 = vmatprep.subr.bf16.mxu0 0
    %2590 = vmatpush1.bf16.msra.mxu0 0
    %2591 = vmatprep.subr.bf16.mxu0 0
    %2592 = vmatpush1.bf16.msra.mxu0 0
    %2593 = vmatprep.subr.bf16.mxu0 0
    %2594 = vmatpush1.bf16.msra.mxu0 0
    %2595 = vmatprep.subr.bf16.mxu0 0
    %2596 = vmatpush1.bf16.msra.mxu0 0
    %2597 = vmatprep.subr.bf16.mxu0 0
    %2598 = vmatpush1.bf16.msra.mxu0 0
    %2599 = vmatprep.subr.bf16.mxu0 0
    %2600 = vmatpush1.bf16.msra.mxu0 0
    %2601 = vmatprep.subr.bf16.mxu0 0
    %2602 = vmatpush1.bf16.msra.mxu0 0
    %2603 = vmatprep.subr.bf16.mxu0 0
    %2604 = vmatpush1.bf16.msra.mxu0 0
    %2605 = vmatprep.subr.bf16.mxu0 0
    %2606 = vmatpush1.bf16.msra.mxu0 0
    %2607 = vmatprep.mubr.bf16.mxu0 0
    %2608 = vmatmul.mubr.bf16.gmra.mrb[0].mxu0 %v2573
    %v2609 = vpop.f32.mrb[0].mxu0
    %v2610 = vadd.f32 0.0, %v2609
    %v2611 = vpop.f32.mrb[0].mxu0
    %v2612 = vpop.f32.mrb[0].mxu0
    %v2613 = vpop.f32.mrb[0].mxu0
    %2614 = vdwg.mxu0
    %v2619 = vunpack.c.l.b16 %v2545
    %v2620 = vunpack.c.l.b16 %v2546
    %v2621 = vunpack.c.l.b16 %v2547
    %v2622 = vunpack.c.l.b16 %v2548
    %v2623 = vpack.c.b16 %v2620, %v2619
    %v2624 = vpack.c.b16 %v2622, %v2621
    %v2628 = vsel %vm2571, %v2544, 0
    %2630 = vmatprep.subr.bf16.mxu0 0
    %2631 = vmatpush1.bf16.msra.mxu0 %v2623
    %2632 = vmatprep.subr.bf16.mxu0 0
    %2633 = vmatpush1.bf16.msra.mxu0 %v2624
    %2634 = vmatprep.subr.bf16.mxu0 0
    %2635 = vmatpush1.bf16.msra.mxu0 0
    %2636 = vmatprep.subr.bf16.mxu0 0
    %2637 = vmatpush1.bf16.msra.mxu0 0
    %2638 = vmatprep.subr.bf16.mxu0 0
    %2639 = vmatpush1.bf16.msra.mxu0 0
    %2640 = vmatprep.subr.bf16.mxu0 0
    %2641 = vmatpush1.bf16.msra.mxu0 0
    %2642 = vmatprep.subr.bf16.mxu0 0
    %2643 = vmatpush1.bf16.msra.mxu0 0
    %2644 = vmatprep.subr.bf16.mxu0 0
    %2645 = vmatpush1.bf16.msra.mxu0 0
    %2646 = vmatprep.subr.bf16.mxu0 0
    %2647 = vmatpush1.bf16.msra.mxu0 0
    %2648 = vmatprep.subr.bf16.mxu0 0
    %2649 = vmatpush1.bf16.msra.mxu0 0
    %2650 = vmatprep.subr.bf16.mxu0 0
    %2651 = vmatpush1.bf16.msra.mxu0 0
    %2652 = vmatprep.subr.bf16.mxu0 0
    %2653 = vmatpush1.bf16.msra.mxu0 0
    %2654 = vmatprep.subr.bf16.mxu0 0
    %2655 = vmatpush1.bf16.msra.mxu0 0
    %2656 = vmatprep.subr.bf16.mxu0 0
    %2657 = vmatpush1.bf16.msra.mxu0 0
    %2658 = vmatprep.subr.bf16.mxu0 0
    %2659 = vmatpush1.bf16.msra.mxu0 0
    %2660 = vmatprep.subr.bf16.mxu0 0
    %2661 = vmatpush1.bf16.msra.mxu0 0
    %2662 = vmatprep.mubr.bf16.mxu0 0
    %2663 = vmatmul.mubr.bf16.gmra.mrb[0].mxu0 %v2628
    %v2664 = vpop.f32.mrb[0].mxu0
    %v2665 = vadd.f32 %v2610, %v2664
    %v2666 = vpop.f32.mrb[0].mxu0
    %v2667 = vpop.f32.mrb[0].mxu0
    %v2668 = vpop.f32.mrb[0].mxu0
    %2669 = vdwg.mxu0
    %s2670 = sld [smem:[#allocation2 + $0x83]]
    %v2671 = vmul.f32 %v2543, %v2552
    %v2672 = vstv %s2670
    %v2673 = vmul.f32 %v2672, %v2543
    %v2674 = vsub.f32 %v2671, %v2673
    %v2675 = vpack.c.bf16 %v2674, %v2674
    %s2676 = scalar_lea.vmem %s6, 32
    %v2677 = vld [vmem:[%s2676] sm:$0xf]
    %v2678 = vld [vmem:[%s2676 + $0x4] sm:$0xf]
    %v2679 = vld [vmem:[%s2676 + $0x8] sm:$0xf]
    %v2680 = vld [vmem:[%s2676 + $0xc] sm:$0xf]
    %v2685 = vunpack.c.l.b16 %v2677
    %v2686 = vunpack.c.l.b16 %v2678
    %v2687 = vunpack.c.l.b16 %v2679
    %v2688 = vunpack.c.l.b16 %v2680
    %v2689 = vpack.c.b16 %v2686, %v2685
    %v2690 = vpack.c.b16 %v2688, %v2687
    %v2694 = vsel %vm2571, %v2675, 0
    %2696 = vmatprep.subr.bf16.mxu0 0
    %2697 = vmatpush1.bf16.msra.mxu0 %v2689
    %2698 = vmatprep.subr.bf16.mxu0 0
    %2699 = vmatpush1.bf16.msra.mxu0 %v2690
    %2700 = vmatprep.subr.bf16.mxu0 0
    %2701 = vmatpush1.bf16.msra.mxu0 0
    %2702 = vmatprep.subr.bf16.mxu0 0
    %2703 = vmatpush1.bf16.msra.mxu0 0
    %2704 = vmatprep.subr.bf16.mxu0 0
    %2705 = vmatpush1.bf16.msra.mxu0 0
    %2706 = vmatprep.subr.bf16.mxu0 0
    %2707 = vmatpush1.bf16.msra.mxu0 0
    %2708 = vmatprep.subr.bf16.mxu0 0
    %2709 = vmatpush1.bf16.msra.mxu0 0
    %2710 = vmatprep.subr.bf16.mxu0 0
    %2711 = vmatpush1.bf16.msra.mxu0 0
    %2712 = vmatprep.subr.bf16.mxu0 0
    %2713 = vmatpush1.bf16.msra.mxu0 0
    %2714 = vmatprep.subr.bf16.mxu0 0
    %2715 = vmatpush1.bf16.msra.mxu0 0
    %2716 = vmatprep.subr.bf16.mxu0 0
    %2717 = vmatpush1.bf16.msra.mxu0 0
    %2718 = vmatprep.subr.bf16.mxu0 0
    %2719 = vmatpush1.bf16.msra.mxu0 0
    %2720 = vmatprep.subr.bf16.mxu0 0
    %2721 = vmatpush1.bf16.msra.mxu0 0
    %2722 = vmatprep.subr.bf16.mxu0 0
    %2723 = vmatpush1.bf16.msra.mxu0 0
    %2724 = vmatprep.subr.bf16.mxu0 0
    %2725 = vmatpush1.bf16.msra.mxu0 0
    %2726 = vmatprep.subr.bf16.mxu0 0
    %2727 = vmatpush1.bf16.msra.mxu0 0
    %2728 = vmatprep.mubr.bf16.mxu0 0
    %2729 = vmatmul.mubr.bf16.gmra.mrb[0].mxu0 %v2694
    %v2730 = vpop.f32.mrb[0].mxu0
    %v2731 = vadd.f32 0.0, %v2730
    %v2732 = vpop.f32.mrb[0].mxu0
    %v2733 = vpop.f32.mrb[0].mxu0
    %v2734 = vpop.f32.mrb[0].mxu0
    %2735 = vdwg.mxu0
    %v2736 = vadd.f32 %v2665, %v2731
    %s2737 = sld [smem:[#allocation2 + $0x84]]
    %v2738 = vmul.f32 %v2543, %v2674
    %v2739 = vstv %s2737
    %v2740 = vmul.f32 %v2739, %v2552
    %v2741 = vsub.f32 %v2738, %v2740
    %v2742 = vpack.c.bf16 %v2741, %v2741
    %s2743 = scalar_lea.vmem %s6, 48
    %v2744 = vld [vmem:[%s2743] sm:$0xf]
    %v2745 = vld [vmem:[%s2743 + $0x4] sm:$0xf]
    %v2746 = vld [vmem:[%s2743 + $0x8] sm:$0xf]
    %v2747 = vld [vmem:[%s2743 + $0xc] sm:$0xf]
    %v2752 = vunpack.c.l.b16 %v2744
    %v2753 = vunpack.c.l.b16 %v2745
    %v2754 = vunpack.c.l.b16 %v2746
    %v2755 = vunpack.c.l.b16 %v2747
    %v2756 = vpack.c.b16 %v2753, %v2752
    %v2757 = vpack.c.b16 %v2755, %v2754
    %v2761 = vsel %vm2571, %v2742, 0
    %2763 = vmatprep.subr.bf16.mxu0 0
    %2764 = vmatpush1.bf16.msra.mxu0 %v2756
    %2765 = vmatprep.subr.bf16.mxu0 0
    %2766 = vmatpush1.bf16.msra.mxu0 %v2757
    %2767 = vmatprep.subr.bf16.mxu0 0
    %2768 = vmatpush1.bf16.msra.mxu0 0
    %2769 = vmatprep.subr.bf16.mxu0 0
    %2770 = vmatpush1.bf16.msra.mxu0 0
    %2771 = vmatprep.subr.bf16.mxu0 0
    %2772 = vmatpush1.bf16.msra.mxu0 0
    %2773 = vmatprep.subr.bf16.mxu0 0
    %2774 = vmatpush1.bf16.msra.mxu0 0
    %2775 = vmatprep.subr.bf16.mxu0 0
    %2776 = vmatpush1.bf16.msra.mxu0 0
    %2777 = vmatprep.subr.bf16.mxu0 0
    %2778 = vmatpush1.bf16.msra.mxu0 0
    %2779 = vmatprep.subr.bf16.mxu0 0
    %2780 = vmatpush1.bf16.msra.mxu0 0
    %2781 = vmatprep.subr.bf16.mxu0 0
    %2782 = vmatpush1.bf16.msra.mxu0 0
    %2783 = vmatprep.subr.bf16.mxu0 0
    %2784 = vmatpush1.bf16.msra.mxu0 0
    %2785 = vmatprep.subr.bf16.mxu0 0
    %2786 = vmatpush1.bf16.msra.mxu0 0
    %2787 = vmatprep.subr.bf16.mxu0 0
    %2788 = vmatpush1.bf16.msra.mxu0 0
    %2789 = vmatprep.subr.bf16.mxu0 0
    %2790 = vmatpush1.bf16.msra.mxu0 0
    %2791 = vmatprep.subr.bf16.mxu0 0
    %2792 = vmatpush1.bf16.msra.mxu0 0
    %2793 = vmatprep.subr.bf16.mxu0 0
    %2794 = vmatpush1.bf16.msra.mxu0 0
    %2795 = vmatprep.mubr.bf16.mxu0 0
    %2796 = vmatmul.mubr.bf16.gmra.mrb[0].mxu0 %v2761
    %v2797 = vpop.f32.mrb[0].mxu0
    %v2798 = vadd.f32 0.0, %v2797
    %v2799 = vpop.f32.mrb[0].mxu0
    %v2800 = vpop.f32.mrb[0].mxu0
    %v2801 = vpop.f32.mrb[0].mxu0
    %2802 = vdwg.mxu0
    %v2803 = vadd.f32 %v2736, %v2798
    %v2804 = vld [vmem:[%s7] sm:$0x1]
    %v2806 = vlaneseq
    %v2807 = vshrl.u32 %v2806, 7
    %v2808 = vsub.s32 0, %v2807
    %v2809 = vrot.slane %v2804, %v2808
    %v2811 = vadd.f32 %v2803, %v2809
    %vm2812 = vcmask 123904
    %v2813 = vsel %vm2812, %v2811, 0.0
    %2814 = vadd.xlane.f32.xlu0 %v2813
    %v2815 = vpop.xlane.xlu0 %2814
    %v2816 = vrcp.pop 16.0
    %v2817 = vmul.f32 %v2815, %v2816
    %v2818 = vsub.f32 %v2811, %v2817
    %v2819 = vmul.f32 %v2818, %v2818
    %v2820 = vsel %vm2812, %v2819, 0.0
    %2821 = vadd.xlane.f32.xlu0 %v2820
    %v2822 = vpop.xlane.xlu0 %2821
    %v2823 = vmul.f32 %v2822, %v2816
    %v2824 = vadd.f32 %v2823, 1e-05
    %v2825 = vrsqrt.pop %v2824
    %v2826 = vmul.f32 %v2818, %v2825
    %v2827 = vld [vmem:[%s8] sm:$0x1]
    %v2829 = vlaneseq
    %v2830 = vshrl.u32 %v2829, 7
    %v2831 = vsub.s32 0, %v2830
    %v2832 = vrot.slane %v2827, %v2831
    %v2834 = vmul.f32 %v2826, %v2832
    %v2835 = vld [vmem:[%s9] sm:$0x1]
    %v2837 = vlaneseq
    %v2838 = vshrl.u32 %v2837, 7
    %v2839 = vsub.s32 0, %v2838
    %v2840 = vrot.slane %v2835, %v2839
    %v2842 = vadd.f32 %v2834, %v2840
    %v2843 = vtanh.pop %v2842
    %v2844 = vpack.c.bf16 %v2843, %v2843
    %v2845 = vld [vmem:[%s10] sm:$0xf]
    %v2846 = vld [vmem:[%s10 + $0x4] sm:$0xf]
    %s2847 = sld [smem:[#allocation2 + $0x102]]
    %v2848 = vmul.f32 %v2843, %v2843
    %v2849 = vstv %s2847
    %v2850 = vsub.f32 %v2848, %v2849
    %v2851 = vpack.c.bf16 %v2850, %v2850
    %s2852 = scalar_lea.vmem %s10, 8
    %v2853 = vld [vmem:[%s2852] sm:$0xf]
    %v2854 = vld [vmem:[%s2852 + $0x4] sm:$0xf]
    %v2857 = vunpack.c.l.b16 %v2853
    %v2858 = vunpack.c.l.b16 %v2854
    %v2859 = vpack.c.b16 %v2858, %v2857
    %v2862 = vsel %vm655, %v2851, 0
    %2864 = vmatprep.subr.bf16.mxu0 0
    %2865 = vmatpush1.bf16.msra.mxu0 %v2859
    %2866 = vmatprep.subr.bf16.mxu0 0
    %2867 = vmatpush1.bf16.msra.mxu0 0
    %2868 = vmatprep.subr.bf16.mxu0 0
    %2869 = vmatpush1.bf16.msra.mxu0 0
    %2870 = vmatprep.subr.bf16.mxu0 0
    %2871 = vmatpush1.bf16.msra.mxu0 0
    %2872 = vmatprep.subr.bf16.mxu0 0
    %2873 = vmatpush1.bf16.msra.mxu0 0
    %2874 = vmatprep.subr.bf16.mxu0 0
    %2875 = vmatpush1.bf16.msra.mxu0 0
    %2876 = vmatprep.subr.bf16.mxu0 0
    %2877 = vmatpush1.bf16.msra.mxu0 0
    %2878 = vmatprep.subr.bf16.mxu0 0
    %2879 = vmatpush1.bf16.msra.mxu0 0
    %2880 = vmatprep.subr.bf16.mxu0 0
    %2881 = vmatpush1.bf16.msra.mxu0 0
    %2882 = vmatprep.subr.bf16.mxu0 0
    %2883 = vmatpush1.bf16.msra.mxu0 0
    %2884 = vmatprep.subr.bf16.mxu0 0
    %2885 = vmatpush1.bf16.msra.mxu0 0
    %2886 = vmatprep.subr.bf16.mxu0 0
    %2887 = vmatpush1.bf16.msra.mxu0 0
    %2888 = vmatprep.subr.bf16.mxu0 0
    %2889 = vmatpush1.bf16.msra.mxu0 0
    %2890 = vmatprep.subr.bf16.mxu0 0
    %2891 = vmatpush1.bf16.msra.mxu0 0
    %2892 = vmatprep.subr.bf16.mxu0 0
    %2893 = vmatpush1.bf16.msra.mxu0 0
    %2894 = vmatprep.subr.bf16.mxu0 0
    %2895 = vmatpush1.bf16.msra.mxu0 0
    %2896 = vmatprep.mubr.bf16.mxu0 0
    %2897 = vmatmul.mubr.bf16.gmra.mrb[0].mxu0 %v2862
    %v2898 = vpop.f32.mrb[0].mxu0
    %v2899 = vadd.f32 0.0, %v2898
    %v2900 = vpop.f32.mrb[0].mxu0
    %v2901 = vpop.f32.mrb[0].mxu0
    %v2902 = vpop.f32.mrb[0].mxu0
    %2903 = vdwg.mxu0
    %v2906 = vunpack.c.l.b16 %v2845
    %v2907 = vunpack.c.l.b16 %v2846
    %v2908 = vpack.c.b16 %v2907, %v2906
    %v2911 = vsel %vm655, %v2844, 0
    %2913 = vmatprep.subr.bf16.mxu0 0
    %2914 = vmatpush1.bf16.msra.mxu0 %v2908
    %2915 = vmatprep.subr.bf16.mxu0 0
    %2916 = vmatpush1.bf16.msra.mxu0 0
    %2917 = vmatprep.subr.bf16.mxu0 0
    %2918 = vmatpush1.bf16.msra.mxu0 0
    %2919 = vmatprep.subr.bf16.mxu0 0
    %2920 = vmatpush1.bf16.msra.mxu0 0
    %2921 = vmatprep.subr.bf16.mxu0 0
    %2922 = vmatpush1.bf16.msra.mxu0 0
    %2923 = vmatprep.subr.bf16.mxu0 0
    %2924 = vmatpush1.bf16.msra.mxu0 0
    %2925 = vmatprep.subr.bf16.mxu0 0
    %2926 = vmatpush1.bf16.msra.mxu0 0
    %2927 = vmatprep.subr.bf16.mxu0 0
    %2928 = vmatpush1.bf16.msra.mxu0 0
    %2929 = vmatprep.subr.bf16.mxu0 0
    %2930 = vmatpush1.bf16.msra.mxu0 0
    %2931 = vmatprep.subr.bf16.mxu0 0
    %2932 = vmatpush1.bf16.msra.mxu0 0
    %2933 = vmatprep.subr.bf16.mxu0 0
    %2934 = vmatpush1.bf16.msra.mxu0 0
    %2935 = vmatprep.subr.bf16.mxu0 0
    %2936 = vmatpush1.bf16.msra.mxu0 0
    %2937 = vmatprep.subr.bf16.mxu0 0
    %2938 = vmatpush1.bf16.msra.mxu0 0
    %2939 = vmatprep.subr.bf16.mxu0 0
    %2940 = vmatpush1.bf16.msra.mxu0 0
    %2941 = vmatprep.subr.bf16.mxu0 0
    %2942 = vmatpush1.bf16.msra.mxu0 0
    %2943 = vmatprep.subr.bf16.mxu0 0
    %2944 = vmatpush1.bf16.msra.mxu0 0
    %2945 = vmatprep.mubr.bf16.mxu0 0
    %2946 = vmatmul.mubr.bf16.gmra.mrb[0].mxu0 %v2911
    %v2947 = vpop.f32.mrb[0].mxu0
    %v2948 = vadd.f32 %v2899, %v2947
    %v2949 = vpop.f32.mrb[0].mxu0
    %v2950 = vpop.f32.mrb[0].mxu0
    %v2951 = vpop.f32.mrb[0].mxu0
    %2952 = vdwg.mxu0
    %s2953 = sld [smem:[#allocation2 + $0x103]]
    %v2954 = vmul.f32 %v2843, %v2850
    %v2955 = vstv %s2953
    %v2956 = vmul.f32 %v2955, %v2843
    %v2957 = vsub.f32 %v2954, %v2956
    %v2958 = vpack.c.bf16 %v2957, %v2957
    %s2959 = scalar_lea.vmem %s10, 16
    %v2960 = vld [vmem:[%s2959] sm:$0xf]
    %v2961 = vld [vmem:[%s2959 + $0x4] sm:$0xf]
    %v2964 = vunpack.c.l.b16 %v2960
    %v2965 = vunpack.c.l.b16 %v2961
    %v2966 = vpack.c.b16 %v2965, %v2964
    %v2969 = vsel %vm655, %v2958, 0
    %2971 = vmatprep.subr.bf16.mxu0 0
    %2972 = vmatpush1.bf16.msra.mxu0 %v2966
    %2973 = vmatprep.subr.bf16.mxu0 0
    %2974 = vmatpush1.bf16.msra.mxu0 0
    %2975 = vmatprep.subr.bf16.mxu0 0
    %2976 = vmatpush1.bf16.msra.mxu0 0
    %2977 = vmatprep.subr.bf16.mxu0 0
    %2978 = vmatpush1.bf16.msra.mxu0 0
    %2979 = vmatprep.subr.bf16.mxu0 0
    %2980 = vmatpush1.bf16.msra.mxu0 0
    %2981 = vmatprep.subr.bf16.mxu0 0
    %2982 = vmatpush1.bf16.msra.mxu0 0
    %2983 = vmatprep.subr.bf16.mxu0 0
    %2984 = vmatpush1.bf16.msra.mxu0 0
    %2985 = vmatprep.subr.bf16.mxu0 0
    %2986 = vmatpush1.bf16.msra.mxu0 0
    %2987 = vmatprep.subr.bf16.mxu0 0
    %2988 = vmatpush1.bf16.msra.mxu0 0
    %2989 = vmatprep.subr.bf16.mxu0 0
    %2990 = vmatpush1.bf16.msra.mxu0 0
    %2991 = vmatprep.subr.bf16.mxu0 0
    %2992 = vmatpush1.bf16.msra.mxu0 0
    %2993 = vmatprep.subr.bf16.mxu0 0
    %2994 = vmatpush1.bf16.msra.mxu0 0
    %2995 = vmatprep.subr.bf16.mxu0 0
    %2996 = vmatpush1.bf16.msra.mxu0 0
    %2997 = vmatprep.subr.bf16.mxu0 0
    %2998 = vmatpush1.bf16.msra.mxu0 0
    %2999 = vmatprep.subr.bf16.mxu0 0
    %3000 = vmatpush1.bf16.msra.mxu0 0
    %3001 = vmatprep.subr.bf16.mxu0 0
    %3002 = vmatpush1.bf16.msra.mxu0 0
    %3003 = vmatprep.mubr.bf16.mxu0 0
    %3004 = vmatmul.mubr.bf16.gmra.mrb[0].mxu0 %v2969
    %v3005 = vpop.f32.mrb[0].mxu0
    %v3006 = vadd.f32 0.0, %v3005
    %v3007 = vpop.f32.mrb[0].mxu0
    %v3008 = vpop.f32.mrb[0].mxu0
    %v3009 = vpop.f32.mrb[0].mxu0
    %3010 = vdwg.mxu0
    %v3011 = vadd.f32 %v2948, %v3006
    %s3012 = sld [smem:[#allocation2 + $0x104]]
    %v3013 = vmul.f32 %v2843, %v2957
    %v3014 = vstv %s3012
    %v3015 = vmul.f32 %v3014, %v2850
    %v3016 = vsub.f32 %v3013, %v3015
    %v3017 = vpack.c.bf16 %v3016, %v3016
    %s3018 = scalar_lea.vmem %s10, 24
    %v3019 = vld [vmem:[%s3018] sm:$0xf]
    %v3020 = vld [vmem:[%s3018 + $0x4] sm:$0xf]
    %v3023 = vunpack.c.l.b16 %v3019
    %v3024 = vunpack.c.l.b16 %v3020
    %v3025 = vpack.c.b16 %v3024, %v3023
    %v3028 = vsel %vm655, %v3017, 0
    %3030 = vmatprep.subr.bf16.mxu0 0
    %3031 = vmatpush1.bf16.msra.mxu0 %v3025
    %3032 = vmatprep.subr.bf16.mxu0 0
    %3033 = vmatpush1.bf16.msra.mxu0 0
    %3034 = vmatprep.subr.bf16.mxu0 0
    %3035 = vmatpush1.bf16.msra.mxu0 0
    %3036 = vmatprep.subr.bf16.mxu0 0
    %3037 = vmatpush1.bf16.msra.mxu0 0
    %3038 = vmatprep.subr.bf16.mxu0 0
    %3039 = vmatpush1.bf16.msra.mxu0 0
    %3040 = vmatprep.subr.bf16.mxu0 0
    %3041 = vmatpush1.bf16.msra.mxu0 0
    %3042 = vmatprep.subr.bf16.mxu0 0
    %3043 = vmatpush1.bf16.msra.mxu0 0
    %3044 = vmatprep.subr.bf16.mxu0 0
    %3045 = vmatpush1.bf16.msra.mxu0 0
    %3046 = vmatprep.subr.bf16.mxu0 0
    %3047 = vmatpush1.bf16.msra.mxu0 0
    %3048 = vmatprep.subr.bf16.mxu0 0
    %3049 = vmatpush1.bf16.msra.mxu0 0
    %3050 = vmatprep.subr.bf16.mxu0 0
    %3051 = vmatpush1.bf16.msra.mxu0 0
    %3052 = vmatprep.subr.bf16.mxu0 0
    %3053 = vmatpush1.bf16.msra.mxu0 0
    %3054 = vmatprep.subr.bf16.mxu0 0
    %3055 = vmatpush1.bf16.msra.mxu0 0
    %3056 = vmatprep.subr.bf16.mxu0 0
    %3057 = vmatpush1.bf16.msra.mxu0 0
    %3058 = vmatprep.subr.bf16.mxu0 0
    %3059 = vmatpush1.bf16.msra.mxu0 0
    %3060 = vmatprep.subr.bf16.mxu0 0
    %3061 = vmatpush1.bf16.msra.mxu0 0
    %3062 = vmatprep.mubr.bf16.mxu0 0
    %3063 = vmatmul.mubr.bf16.gmra.mrb[0].mxu0 %v3028
    %v3064 = vpop.f32.mrb[0].mxu0
    %v3065 = vadd.f32 0.0, %v3064
    %v3066 = vpop.f32.mrb[0].mxu0
    %v3067 = vpop.f32.mrb[0].mxu0
    %v3068 = vpop.f32.mrb[0].mxu0
    %3069 = vdwg.mxu0
    %v3070 = vadd.f32 %v3011, %v3065
    %v3071 = vld [vmem:[%s11] sm:$0x1]
    %v3073 = vlaneseq
    %v3074 = vshrl.u32 %v3073, 7
    %v3075 = vsub.s32 0, %v3074
    %v3076 = vrot.slane %v3071, %v3075
    %v3078 = vadd.f32 %v3070, %v3076
    %vm3079 = vcmask 74752
    %3080 = vst.msk [vmem:[#allocation5] sm:$0x3] %vm3079, %v3078
    // Predicated region
    $region54: #{gram_forward.1} parent=1 // pred_check
      _
    $region55: #{gram_forward.1} parent=1 // pred_check_branch
      %3082 = sbr.rel (0) target = $region57
    $region56: #{gram_forward.1} parent=1 // pred_region
      %s3084 = ssub.s32 32, 32
      %3085 = vsyncadd [#allocation3], %s3084
      %s3087 = sshll.u32 [#allocation5], 4
      %s3088 = int_to_ptr.vmem [resolvable:$true] %s3087
      %3090 = dma.vmem_to_hbm [thread:$0]  %s3088, 32, %s12, [#allocation3]
    $region57: #{gram_forward.1} parent=1 // pred_fallthru
      _
    // Predicated region
    $region58: #{gram_forward.1} parent=1 // pred_check
      _
    $region59: #{gram_forward.1} parent=1 // pred_check_branch
      %3092 = sbr.rel (0) target = $region61
    $region60: #{gram_forward.1} parent=1 // pred_region
      %3093 = dma.done [#allocation3], 32
    $region61: #{gram_forward.1} parent=1 // pred_fallthru
      _
    %3094 = vsyncpa [#allocation3], 1
    %3095 = vsyncpa [#allocation4], 1

</llo_original>
